<compile_context>
chip_gen: v7x
topology: tpu7x:2x2x1
jax: 0.10.0
libtpu: 0.0.40
codegen_flags: <defaults>
</compile_context>

<pallas_src>
import functools

import jax
import jax.numpy as jnp
from jax import lax
from jax.experimental import pallas as pl
from jax.experimental.pallas import tpu as pltpu

EPS = 1e-5  # nn.LayerNorm default


def _layernorm(x, gamma, beta):
    mu = jnp.mean(x, axis=-1, keepdims=True)
    var = jnp.mean((x - mu) ** 2, axis=-1, keepdims=True)
    return (x - mu) * lax.rsqrt(var + EPS) * gamma + beta


def _encoder_block_kernel(n_heads,
                          xf_ref, mask_ref,
                          g1_ref, bln1_ref,
                          wq_ref, bq_ref, wkv_ref, bkv_ref,
                          wo_ref, bo_ref,
                          g2_ref, bln2_ref,
                          w1_ref, b1_ref, w2_ref, b2_ref,
                          o_ref,
                          xn_scr, kv_scr):
    S, E = xf_ref.shape          # full (padded) sequence view
    TQ = o_ref.shape[0]          # query-tile rows handled by this grid step
    H = n_heads
    d = E // H
    scale = 1.0 / (d ** 0.5)
    qi = pl.program_id(1)

    # ---- per-batch K/V cache: computed once, reused by every query tile ----
    @pl.when(qi == 0)
    def _():
        xn_f = _layernorm(xf_ref[...], g1_ref[...], bln1_ref[...]).astype(jnp.bfloat16)
        xn_scr[...] = xn_f                                              # (S, E) bf16
        kv = jnp.dot(xn_f, wkv_ref[...],
                     preferred_element_type=jnp.float32) + bkv_ref[...]  # (S, 2E) f32
        kv_scr[...] = kv.astype(jnp.bfloat16)

    # Query-tile rows, sliced from the single full-sequence x block / LN cache.
    row0 = pl.multiple_of(qi * TQ, TQ)
    xt = xf_ref[pl.ds(row0, TQ), :]       # (TQ, E) f32 residual input
    xn_t = xn_scr[pl.ds(row0, TQ), :]     # (TQ, E) bf16 normalized rows

    # Additive attention bias (1 = attend, 0 = masked / padded key).
    mask_bias = jnp.where(mask_ref[...] > 0, 0.0, -1e9)                 # (1, S) f32

    # ---------------- sub-layer 1: x + MHA(LN1(x)) ----------------
    q = jnp.dot(xn_t, wq_ref[...],
                preferred_element_type=jnp.float32) + bq_ref[...]        # (TQ, E)
    q_bf = (q * scale).astype(jnp.bfloat16)   # fold 1/sqrt(d) into q once

    # TODO(synk): for H >= 8 consider a lax.fori_loop(..., unroll=2) over a
    # (TQ, H, d) view to bound per-head live ranges; static unroll is fine here.
    ctx = []
    for h in range(H):                                   # static unroll over heads
        qh = q_bf[:, h * d:(h + 1) * d]                  # (TQ, d) bf16
        kh = kv_scr[:, h * d:(h + 1) * d]                # (S, d)  bf16
        vh = kv_scr[:, E + h * d:E + (h + 1) * d]        # (S, d)  bf16
        s = lax.dot_general(qh, kh, (((1,), (1,)), ((), ())),
                            preferred_element_type=jnp.float32)          # (TQ, S)
        s = s + mask_bias
        s = s - jnp.max(s, axis=-1, keepdims=True)
        p = jnp.exp(s)                                   # f32 exp (safe on all chips)
        p = p * pl.reciprocal(jnp.sum(p, axis=-1, keepdims=True), approx=True)
        ctx.append(jnp.dot(p.astype(jnp.bfloat16), vh,
                           preferred_element_type=jnp.float32).astype(jnp.bfloat16))
    ctx = jnp.concatenate(ctx, axis=-1)                  # (TQ, E) bf16
    attn = jnp.dot(ctx, wo_ref[...],
                   preferred_element_type=jnp.float32) + bo_ref[...]     # one K=E matmul
    y = xt + attn                  # dropout_1 = identity (eval mode)

    # ---------------- sub-layer 2: y + FFN(LN2(y)) ----------------
    yn = _layernorm(y, g2_ref[...], bln2_ref[...]).astype(jnp.bfloat16)
    h1 = jnp.dot(yn, w1_ref[...], preferred_element_type=jnp.float32) + b1_ref[...]
    h1 = jnp.maximum(h1, 0.0).astype(jnp.bfloat16)       # ReLU (inner dropout = id)
    ff = jnp.dot(h1, w2_ref[...], preferred_element_type=jnp.float32) + b2_ref[...]
    o_ref[...] = (y + ff).astype(o_ref.dtype)            # dropout_2 = identity
    # TODO(synk): training-mode stochastic dropout (p>0) not implemented; kernel
    # reproduces eval-mode (dropout == identity) semantics.
    # TODO(synk): for very large d_ff on v7x (64 MiB VMEM), tile the FFN over F
    # with an inner pl.loop instead of keeping full W1/W2 resident.


def _vmem_capacity_bytes():
    try:
        return int(pltpu.get_tpu_info().vmem_capacity_bytes)
    except Exception:
        return 64 * 2 ** 20  # conservative fallback (v7x-sized)


def _rep_spec(shape):
    """Grid-invariant parameter spec; single-buffered when supported."""
    idx = lambda b, qi: (0,) * len(shape)
    try:
        return pl.BlockSpec(shape, idx, pipeline_mode=pl.Buffered(1))
    except Exception:  # older/newer API without pipeline_mode -> default buffering
        return pl.BlockSpec(shape, idx)


def encoder_block(x, enc_mask, params, n_heads):
    B, S, E = x.shape
    F = params["w1"].shape[1]
    H = n_heads
    assert E % H == 0

    vmem_cap = _vmem_capacity_bytes()

    # Query-tile size + padding: whole sequence when small; otherwise 128-row
    # tiles (256 when the chip has >=100 MiB VMEM, i.e. v5e/v6e) and pad S up.
    if S <= 128:
        TQ, S_pad = S, S
    else:
        TQ = 256 if vmem_cap >= 100 * 2 ** 20 else 128
        S_pad = -(-S // TQ) * TQ
    if S_pad != S:
        x = jnp.pad(x, ((0, 0), (0, S_pad - S), (0, 0)))
        enc_mask = jnp.pad(enc_mask, ((0, 0), (0, 0), (0, S_pad - S)))  # pad keys masked
    n_qt = S_pad // TQ

    bf16 = jnp.bfloat16
    f32 = jnp.float32

    # bf16 MXU weights at the call boundary; biases / LN params stay f32.
    # TODO(synk): optionally take x / emit the output in bf16 to halve activation
    # HBM traffic when the block is memory-bound.
    wq = params["wq"].astype(bf16)
    wkv = jnp.concatenate([params["wk"], params["wv"]], axis=1).astype(bf16)
    bq = params["bq"].astype(f32)
    bkv = jnp.concatenate([params["bk"], params["bv"]], axis=1).astype(f32)
    wo = params["wo"].astype(bf16)
    w1 = params["w1"].astype(bf16)
    w2 = params["w2"].astype(bf16)

    in_specs = [
        pl.BlockSpec((None, S_pad, E), lambda b, qi: (b, 0, 0)),   # x, full sequence
        pl.BlockSpec((None, 1, S_pad), lambda b, qi: (b, 0, 0)),   # enc_mask
        _rep_spec((1, E)), _rep_spec((1, E)),                      # LN1 gamma / beta
        _rep_spec((E, E)), _rep_spec((1, E)),                      # Wq, bq
        _rep_spec((E, 2 * E)), _rep_spec((1, 2 * E)),              # Wkv, bkv
        _rep_spec((E, E)), _rep_spec((1, E)),                      # Wo, bo
        _rep_spec((1, E)), _rep_spec((1, E)),                      # LN2 gamma / beta
        _rep_spec((E, F)), _rep_spec((1, F)),                      # W1, b1
        _rep_spec((F, E)), _rep_spec((1, E)),                      # W2, b2
    ]

    scratch_shapes = [
        pltpu.VMEM((S_pad, E), bf16),       # cached LN1(x), full sequence
        pltpu.VMEM((S_pad, 2 * E), bf16),   # cached K/V, full sequence
    ]

    # VMEM budget: single-buffered bf16 weights + double-buffered activation
    # blocks + bf16 caches + f32 intermediates, with pipeline headroom; capped
    # below the physical capacity of the current chip generation.
    weight_bytes = 2 * (4 * E * E + 2 * E * F)
    act_bytes = 4 * (2 * S_pad * E + 2 * TQ * E + 2 * S_pad)
    cache_bytes = 2 * 3 * S_pad * E
    interm_bytes = 4 * (2 * TQ * S_pad + TQ * F + 8 * TQ * E)
    est = weight_bytes + act_bytes + cache_bytes + interm_bytes
    vmem_limit = int(min(max(int(1.5 * est), 32 * 2 ** 20), int(0.85 * vmem_cap)))

    flops = int(2 * B * S_pad * E * 3 * E          # QKV projections
                + 4 * B * S_pad * S_pad * E        # QK^T + PV
                + 2 * B * S_pad * E * E            # Wo
                + 4 * B * S_pad * E * F)           # FFN
    transcendentals = int(B * H * S_pad * S_pad)   # softmax exp
    bytes_accessed = int(8 * B * S_pad * E + 4 * B * S_pad + weight_bytes)

    kernel = functools.partial(_encoder_block_kernel, H)
    out = pl.pallas_call(
        kernel,
        out_shape=jax.ShapeDtypeStruct((B, S_pad, E), jnp.float32),
        grid=(B, n_qt),
        in_specs=in_specs,
        out_specs=pl.BlockSpec((None, TQ, E), lambda b, qi: (b, qi, 0)),
        scratch_shapes=scratch_shapes,
        compiler_params=pltpu.CompilerParams(
            dimension_semantics=("parallel", "arbitrary"),
            vmem_limit_bytes=vmem_limit,
        ),
        cost_estimate=pl.CostEstimate(flops=flops,
                                      transcendentals=transcendentals,
                                      bytes_accessed=bytes_accessed),
    )(x, enc_mask,
      params["g1"], params["bln1"],
      wq, bq, wkv, bkv,
      wo, params["bo"],
      params["g2"], params["bln2"],
      w1, params["b1"], w2, params["b2"])

    if S_pad != S:
        out = out[:, :S, :]
    return out


def encoder_block_ref(x, enc_mask, params, n_heads):
    """Pure-JAX (f32) reference with identical eval-mode semantics."""
    B, S, E = x.shape
    d = E // n_heads

    def ln(v, g, b):
        mu = jnp.mean(v, -1, keepdims=True)
        var = jnp.mean((v - mu) ** 2, -1, keepdims=True)
        return (v - mu) / jnp.sqrt(var + EPS) * g + b

    xn = ln(x, params["g1"], params["bln1"])
    q = xn @ params["wq"] + params["bq"]
    k = xn @ params["wk"] + params["bk"]
    v = xn @ params["wv"] + params["bv"]
    q = q.reshape(B, S, n_heads, d).transpose(0, 2, 1, 3)
    k = k.reshape(B, S, n_heads, d).transpose(0, 2, 1, 3)
    v = v.reshape(B, S, n_heads, d).transpose(0, 2, 1, 3)
    s = jnp.einsum("bhqd,bhkd->bhqk", q, k) / (d ** 0.5)
    s = jnp.where(enc_mask[:, None, :, :] > 0, s, -1e9)
    p = jax.nn.softmax(s, axis=-1)
    attn = jnp.einsum("bhqk,bhkd->bhqd", p, v).transpose(0, 2, 1, 3).reshape(B, S, E)
    x = x + attn @ params["wo"] + params["bo"]
    xn2 = ln(x, params["g2"], params["bln2"])
    ff = jnp.maximum(xn2 @ params["w1"] + params["b1"], 0.0) @ params["w2"] + params["b2"]
    return x + ff


def _make_params(key, E, F):
    ks = jax.random.split(key, 12)
    s = 0.05
    return {
        "g1":   jnp.ones((1, E), jnp.float32),
        "bln1": jnp.zeros((1, E), jnp.float32),
        "wq": s * jax.random.normal(ks[0], (E, E), jnp.float32),
        "bq": s * jax.random.normal(ks[1], (1, E), jnp.float32),
        "wk": s * jax.random.normal(ks[2], (E, E), jnp.float32),
        "bk": s * jax.random.normal(ks[3], (1, E), jnp.float32),
        "wv": s * jax.random.normal(ks[4], (E, E), jnp.float32),
        "bv": s * jax.random.normal(ks[5], (1, E), jnp.float32),
        "wo": s * jax.random.normal(ks[6], (E, E), jnp.float32),
        "bo": s * jax.random.normal(ks[7], (1, E), jnp.float32),
        "g2":   jnp.ones((1, E), jnp.float32),
        "bln2": jnp.zeros((1, E), jnp.float32),
        "w1": s * jax.random.normal(ks[8], (E, F), jnp.float32),
        "b1": s * jax.random.normal(ks[9], (1, F), jnp.float32),
        "w2": s * jax.random.normal(ks[10], (F, E), jnp.float32),
        "b2": s * jax.random.normal(ks[11], (1, E), jnp.float32),
    }


def _run_case(key, B, S, E, H, F):
    kp, kx = jax.random.split(key)
    params = _make_params(kp, E, F)
    x = jax.random.normal(kx, (B, S, E), jnp.float32)
    # mask: batch 0 attends everywhere; batch 1 masks the trailing quarter of keys.
    enc_mask = jnp.ones((B, 1, S), jnp.float32)
    enc_mask = enc_mask.at[1, 0, S - max(1, S // 4):].set(0.0)

    out = jax.block_until_ready(encoder_block(x, enc_mask, params, H))
    ref = encoder_block_ref(x, enc_mask, params, H)

    assert out.shape == (B, S, E)
    assert bool(jnp.all(jnp.isfinite(out)))
    # bf16 MXU inputs + approximate reciprocal -> compare against the f32 reference
    # with a bf16-appropriate tolerance.
    assert jnp.allclose(out, ref, atol=5e-2, rtol=5e-2), "mismatch vs JAX reference"


if __name__ == "__main__":
    k0, k1, k2 = jax.random.split(jax.random.PRNGKey(0), 3)
    # Small config (single query tile per batch element).
    _run_case(k0, B=2, S=8, E=32, H=4, F=64)
    # Lane-aligned config exercising the KV-cached, query-tiled path.
    _run_case(k1, B=2, S=256, E=128, H=4, F=256)
    # Awkward sequence length: exercises the pad-to-tile path (padded keys masked).
    _run_case(k2, B=2, S=160, E=128, H=8, F=256)
    print("KERNEL_OK")
</pallas_src>

<mosaic_0001>
module attributes {stable_mosaic.version = 11 : i64} {
  func.func @_encoder_block_kernel(%arg0: i32, %arg1: i32, %arg2: memref<1x8x32xf32, #tpu.memory_space<vmem>>, %arg3: memref<1x1x8xf32, #tpu.memory_space<vmem>>, %arg4: memref<1x32xf32, #tpu.memory_space<vmem>>, %arg5: memref<1x32xf32, #tpu.memory_space<vmem>>, %arg6: memref<32x32xbf16, #tpu.memory_space<vmem>>, %arg7: memref<1x32xf32, #tpu.memory_space<vmem>>, %arg8: memref<32x64xbf16, #tpu.memory_space<vmem>>, %arg9: memref<1x64xf32, #tpu.memory_space<vmem>>, %arg10: memref<32x32xbf16, #tpu.memory_space<vmem>>, %arg11: memref<1x32xf32, #tpu.memory_space<vmem>>, %arg12: memref<1x32xf32, #tpu.memory_space<vmem>>, %arg13: memref<1x32xf32, #tpu.memory_space<vmem>>, %arg14: memref<32x64xbf16, #tpu.memory_space<vmem>>, %arg15: memref<1x64xf32, #tpu.memory_space<vmem>>, %arg16: memref<64x32xbf16, #tpu.memory_space<vmem>>, %arg17: memref<1x32xf32, #tpu.memory_space<vmem>>, %arg18: memref<1x8x32xf32, #tpu.memory_space<vmem>>, %arg19: memref<8x32xbf16, #tpu.memory_space<vmem>>, %arg20: memref<8x64xbf16, #tpu.memory_space<vmem>>) attributes {dimension_semantics = [#tpu.dimension_semantics<parallel>, #tpu.dimension_semantics<arbitrary>], iteration_bounds = array<i64: 2, 1>, scalar_prefetch = 0 : i64, scratch_operands = 2 : i64, tpu.core_type = #tpu.core_type<tc>, window_params = [{transform_indices = @transform_0, window_bounds = array<i64: 1, 8, 32>}, {transform_indices = @transform_1, window_bounds = array<i64: 1, 1, 8>}, {pipeline_mode = #tpu.pipeline_mode<synchronous>, transform_indices = @transform_2, window_bounds = array<i64: 1, 32>}, {pipeline_mode = #tpu.pipeline_mode<synchronous>, transform_indices = @transform_3, window_bounds = array<i64: 1, 32>}, {pipeline_mode = #tpu.pipeline_mode<synchronous>, transform_indices = @transform_4, window_bounds = array<i64: 32, 32>}, {pipeline_mode = #tpu.pipeline_mode<synchronous>, transform_indices = @transform_5, window_bounds = array<i64: 1, 32>}, {pipeline_mode = #tpu.pipeline_mode<synchronous>, transform_indices = @transform_6, window_bounds = array<i64: 32, 64>}, {pipeline_mode = #tpu.pipeline_mode<synchronous>, transform_indices = @transform_7, window_bounds = array<i64: 1, 64>}, {pipeline_mode = #tpu.pipeline_mode<synchronous>, transform_indices = @transform_8, window_bounds = array<i64: 32, 32>}, {pipeline_mode = #tpu.pipeline_mode<synchronous>, transform_indices = @transform_9, window_bounds = array<i64: 1, 32>}, {pipeline_mode = #tpu.pipeline_mode<synchronous>, transform_indices = @transform_10, window_bounds = array<i64: 1, 32>}, {pipeline_mode = #tpu.pipeline_mode<synchronous>, transform_indices = @transform_11, window_bounds = array<i64: 1, 32>}, {pipeline_mode = #tpu.pipeline_mode<synchronous>, transform_indices = @transform_12, window_bounds = array<i64: 32, 64>}, {pipeline_mode = #tpu.pipeline_mode<synchronous>, transform_indices = @transform_13, window_bounds = array<i64: 1, 64>}, {pipeline_mode = #tpu.pipeline_mode<synchronous>, transform_indices = @transform_14, window_bounds = array<i64: 64, 32>}, {pipeline_mode = #tpu.pipeline_mode<synchronous>, transform_indices = @transform_15, window_bounds = array<i64: 1, 32>}, {transform_indices = @transform_16, window_bounds = array<i64: 1, 8, 32>}]} {
    %c0_i32 = arith.constant 0 : i32
    %0 = arith.cmpi eq, %arg1, %c0_i32 : i32
    %1 = arith.extui %0 : i1 to i32
    %c0_i32_0 = arith.constant 0 : i32
    %2 = arith.cmpi ne, %1, %c0_i32_0 : i32
    scf.if %2 {
      %c0_67 = arith.constant 0 : index
      %c0_68 = arith.constant 0 : index
      %c0_69 = arith.constant 0 : index
      %150 = vector.load %arg2[%c0_67, %c0_68, %c0_69] : memref<1x8x32xf32, #tpu.memory_space<vmem>>, vector<1x8x32xf32>
      %151 = vector.shape_cast %150 : vector<1x8x32xf32> to vector<8x32xf32>
      %c0_70 = arith.constant 0 : index
      %c0_71 = arith.constant 0 : index
      %152 = vector.load %arg4[%c0_70, %c0_71] : memref<1x32xf32, #tpu.memory_space<vmem>>, vector<1x32xf32>
      %c0_72 = arith.constant 0 : index
      %c0_73 = arith.constant 0 : index
      %153 = vector.load %arg5[%c0_72, %c0_73] : memref<1x32xf32, #tpu.memory_space<vmem>>, vector<1x32xf32>
      %cst_74 = arith.constant dense<0.000000e+00> : vector<8xf32>
      %154 = vector.multi_reduction <add>, %151, %cst_74 [1] : vector<8x32xf32> to vector<8xf32>
      %155 = vector.shape_cast %154 : vector<8xf32> to vector<8x1xf32>
      %cst_75 = arith.constant 3.200000e+01 : f32
      %156 = vector.broadcast %cst_75 : f32 to vector<8x1xf32>
      %157 = arith.divf %155, %156 : vector<8x1xf32>
      %158 = vector.broadcast %157 : vector<8x1xf32> to vector<8x32xf32>
      %159 = arith.subf %151, %158 : vector<8x32xf32>
      %160 = arith.mulf %159, %159 : vector<8x32xf32>
      %cst_76 = arith.constant dense<0.000000e+00> : vector<8xf32>
      %161 = vector.multi_reduction <add>, %160, %cst_76 [1] : vector<8x32xf32> to vector<8xf32>
      %162 = vector.shape_cast %161 : vector<8xf32> to vector<8x1xf32>
      %cst_77 = arith.constant 3.200000e+01 : f32
      %163 = vector.broadcast %cst_77 : f32 to vector<8x1xf32>
      %164 = arith.divf %162, %163 : vector<8x1xf32>
      %165 = vector.broadcast %157 : vector<8x1xf32> to vector<8x32xf32>
      %166 = arith.subf %151, %165 : vector<8x32xf32>
      %cst_78 = arith.constant 9.99999974E-6 : f32
      %167 = vector.broadcast %cst_78 : f32 to vector<8x1xf32>
      %168 = arith.addf %164, %167 : vector<8x1xf32>
      %169 = math.rsqrt %168 : vector<8x1xf32>
      %170 = vector.broadcast %169 : vector<8x1xf32> to vector<8x32xf32>
      %171 = arith.mulf %166, %170 : vector<8x32xf32>
      %172 = vector.broadcast %152 : vector<1x32xf32> to vector<8x32xf32>
      %173 = arith.mulf %171, %172 : vector<8x32xf32>
      %174 = vector.broadcast %153 : vector<1x32xf32> to vector<8x32xf32>
      %175 = arith.addf %173, %174 : vector<8x32xf32>
      %176 = arith.truncf %175 : vector<8x32xf32> to vector<8x32xbf16>
      %c0_79 = arith.constant 0 : index
      %c0_80 = arith.constant 0 : index
      %177 = vector.load %arg19[%c0_79, %c0_80] : memref<8x32xbf16, #tpu.memory_space<vmem>>, vector<8x32xbf16>
      tpu.vector_store %arg19[%c0_79, %c0_80], %176 {strides = array<i32>} : memref<8x32xbf16, #tpu.memory_space<vmem>>, vector<8x32xbf16>,
      %c0_81 = arith.constant 0 : index
      %c0_82 = arith.constant 0 : index
      %178 = vector.load %arg8[%c0_81, %c0_82] : memref<32x64xbf16, #tpu.memory_space<vmem>>, vector<32x64xbf16>
      %cst_83 = arith.constant dense<0.000000e+00> : vector<8x64xf32>
      %179 = tpu.matmul %176, %178, %cst_83 {dimension_numbers = #tpu.dot_dimension_numbers<[1], [0], [0], [1], [0, 0, 1, 1], [], []>} : vector<8x32xbf16>, vector<32x64xbf16>, vector<8x64xf32> -> vector<8x64xf32>
      %c0_84 = arith.constant 0 : index
      %c0_85 = arith.constant 0 : index
      %180 = vector.load %arg9[%c0_84, %c0_85] : memref<1x64xf32, #tpu.memory_space<vmem>>, vector<1x64xf32>
      %181 = vector.broadcast %180 : vector<1x64xf32> to vector<8x64xf32>
      %182 = arith.addf %179, %181 : vector<8x64xf32>
      %183 = arith.truncf %182 : vector<8x64xf32> to vector<8x64xbf16>
      %c0_86 = arith.constant 0 : index
      %c0_87 = arith.constant 0 : index
      %184 = vector.load %arg20[%c0_86, %c0_87] : memref<8x64xbf16, #tpu.memory_space<vmem>>, vector<8x64xbf16>
      tpu.vector_store %arg20[%c0_86, %c0_87], %183 {strides = array<i32>} : memref<8x64xbf16, #tpu.memory_space<vmem>>, vector<8x64xbf16>,
    } else {
    }
    %c8_i32 = arith.constant 8 : i32
    %3 = arith.muli %arg1, %c8_i32 : i32
    %4 = tpu.assume_multiple %3, 8 : i32
    %c0 = arith.constant 0 : index
    %5 = arith.index_cast %4 : i32 to index
    %c0_1 = arith.constant 0 : index
    %6 = vector.load %arg2[%c0, %5, %c0_1] : memref<1x8x32xf32, #tpu.memory_space<vmem>>, vector<1x8x32xf32>
    %7 = vector.shape_cast %6 : vector<1x8x32xf32> to vector<8x32xf32>
    %8 = arith.index_cast %4 : i32 to index
    %c0_2 = arith.constant 0 : index
    %9 = vector.load %arg19[%8, %c0_2] : memref<8x32xbf16, #tpu.memory_space<vmem>>, vector<8x32xbf16>
    %c0_3 = arith.constant 0 : index
    %c0_4 = arith.constant 0 : index
    %c0_5 = arith.constant 0 : index
    %10 = vector.load %arg3[%c0_3, %c0_4, %c0_5] : memref<1x1x8xf32, #tpu.memory_space<vmem>>, vector<1x1x8xf32>
    %11 = vector.shape_cast %10 : vector<1x1x8xf32> to vector<1x8xf32>
    %cst = arith.constant 0.000000e+00 : f32
    %12 = vector.broadcast %cst : f32 to vector<1x8xf32>
    %13 = arith.cmpf ogt, %11, %12 : vector<1x8xf32>
    %cst_6 = arith.constant 0.000000e+00 : f32
    %cst_7 = arith.constant -1.000000e+09 : f32
    %14 = vector.broadcast %cst_6 : f32 to vector<1x8xf32>
    %15 = vector.broadcast %cst_7 : f32 to vector<1x8xf32>
    %16 = arith.select %13, %14, %15 : vector<1x8xi1>, vector<1x8xf32>
    %c0_8 = arith.constant 0 : index
    %c0_9 = arith.constant 0 : index
    %17 = vector.load %arg6[%c0_8, %c0_9] : memref<32x32xbf16, #tpu.memory_space<vmem>>, vector<32x32xbf16>
    %cst_10 = arith.constant dense<0.000000e+00> : vector<8x32xf32>
    %18 = tpu.matmul %9, %17, %cst_10 {dimension_numbers = #tpu.dot_dimension_numbers<[1], [0], [0], [1], [0, 0, 1, 1], [], []>} : vector<8x32xbf16>, vector<32x32xbf16>, vector<8x32xf32> -> vector<8x32xf32>
    %c0_11 = arith.constant 0 : index
    %c0_12 = arith.constant 0 : index
    %19 = vector.load %arg7[%c0_11, %c0_12] : memref<1x32xf32, #tpu.memory_space<vmem>>, vector<1x32xf32>
    %20 = vector.broadcast %19 : vector<1x32xf32> to vector<8x32xf32>
    %21 = arith.addf %18, %20 : vector<8x32xf32>
    %cst_13 = arith.constant 0.353553385 : f32
    %22 = vector.broadcast %cst_13 : f32 to vector<8x32xf32>
    %23 = arith.mulf %21, %22 : vector<8x32xf32>
    %24 = arith.truncf %23 : vector<8x32xf32> to vector<8x32xbf16>
    %25 = vector.extract_strided_slice %24 {offsets = [0, 0], sizes = [8, 8], strides = [1, 1]} : vector<8x32xbf16> to vector<8x8xbf16>
    %c0_14 = arith.constant 0 : index
    %c0_15 = arith.constant 0 : index
    %26 = vector.load %arg20[%c0_14, %c0_15] : memref<8x64xbf16, #tpu.memory_space<vmem>>, vector<8x8xbf16>
    %c0_16 = arith.constant 0 : index
    %c32 = arith.constant 32 : index
    %27 = vector.load %arg20[%c0_16, %c32] : memref<8x64xbf16, #tpu.memory_space<vmem>>, vector<8x8xbf16>
    %cst_17 = arith.constant dense<0.000000e+00> : vector<8x8xf32>
    %28 = tpu.matmul %25, %26, %cst_17 {dimension_numbers = #tpu.dot_dimension_numbers<[1], [1], [0], [0], [0, 0, 1, 0], [], []>} : vector<8x8xbf16>, vector<8x8xbf16>, vector<8x8xf32> -> vector<8x8xf32>
    %29 = vector.broadcast %16 : vector<1x8xf32> to vector<8x8xf32>
    %30 = arith.addf %28, %29 : vector<8x8xf32>
    %cst_18 = arith.constant dense<0xFF800000> : vector<8xf32>
    %31 = vector.multi_reduction <maximumf>, %30, %cst_18 [1] : vector<8x8xf32> to vector<8xf32>
    %32 = vector.shape_cast %31 : vector<8xf32> to vector<8x1xf32>
    %33 = vector.broadcast %32 : vector<8x1xf32> to vector<8x8xf32>
    %34 = arith.subf %30, %33 : vector<8x8xf32>
    %35 = math.exp %34 : vector<8x8xf32>
    %cst_19 = arith.constant dense<0.000000e+00> : vector<8xf32>
    %36 = vector.multi_reduction <add>, %35, %cst_19 [1] : vector<8x8xf32> to vector<8xf32>
    %37 = vector.shape_cast %36 : vector<8xf32> to vector<8x1xf32>
    %38 = tpu.reciprocal %37 {approx = true} : vector<8x1xf32> -> vector<8x1xf32>
    %39 = vector.broadcast %38 : vector<8x1xf32> to vector<8x8xf32>
    %40 = arith.mulf %35, %39 : vector<8x8xf32>
    %41 = arith.truncf %40 : vector<8x8xf32> to vector<8x8xbf16>
    %cst_20 = arith.constant dense<0.000000e+00> : vector<8x8xf32>
    %42 = tpu.matmul %41, %27, %cst_20 {dimension_numbers = #tpu.dot_dimension_numbers<[1], [0], [0], [1], [0, 0, 1, 1], [], []>} : vector<8x8xbf16>, vector<8x8xbf16>, vector<8x8xf32> -> vector<8x8xf32>
    %43 = arith.truncf %42 : vector<8x8xf32> to vector<8x8xbf16>
    %44 = vector.extract_strided_slice %24 {offsets = [0, 8], sizes = [8, 8], strides = [1, 1]} : vector<8x32xbf16> to vector<8x8xbf16>
    %c0_21 = arith.constant 0 : index
    %c8 = arith.constant 8 : index
    %45 = vector.load %arg20[%c0_21, %c8] : memref<8x64xbf16, #tpu.memory_space<vmem>>, vector<8x8xbf16>
    %c0_22 = arith.constant 0 : index
    %c40 = arith.constant 40 : index
    %46 = vector.load %arg20[%c0_22, %c40] : memref<8x64xbf16, #tpu.memory_space<vmem>>, vector<8x8xbf16>
    %cst_23 = arith.constant dense<0.000000e+00> : vector<8x8xf32>
    %47 = tpu.matmul %44, %45, %cst_23 {dimension_numbers = #tpu.dot_dimension_numbers<[1], [1], [0], [0], [0, 0, 1, 0], [], []>} : vector<8x8xbf16>, vector<8x8xbf16>, vector<8x8xf32> -> vector<8x8xf32>
    %48 = vector.broadcast %16 : vector<1x8xf32> to vector<8x8xf32>
    %49 = arith.addf %47, %48 : vector<8x8xf32>
    %cst_24 = arith.constant dense<0xFF800000> : vector<8xf32>
    %50 = vector.multi_reduction <maximumf>, %49, %cst_24 [1] : vector<8x8xf32> to vector<8xf32>
    %51 = vector.shape_cast %50 : vector<8xf32> to vector<8x1xf32>
    %52 = vector.broadcast %51 : vector<8x1xf32> to vector<8x8xf32>
    %53 = arith.subf %49, %52 : vector<8x8xf32>
    %54 = math.exp %53 : vector<8x8xf32>
    %cst_25 = arith.constant dense<0.000000e+00> : vector<8xf32>
    %55 = vector.multi_reduction <add>, %54, %cst_25 [1] : vector<8x8xf32> to vector<8xf32>
    %56 = vector.shape_cast %55 : vector<8xf32> to vector<8x1xf32>
    %57 = tpu.reciprocal %56 {approx = true} : vector<8x1xf32> -> vector<8x1xf32>
    %58 = vector.broadcast %57 : vector<8x1xf32> to vector<8x8xf32>
    %59 = arith.mulf %54, %58 : vector<8x8xf32>
    %60 = arith.truncf %59 : vector<8x8xf32> to vector<8x8xbf16>
    %cst_26 = arith.constant dense<0.000000e+00> : vector<8x8xf32>
    %61 = tpu.matmul %60, %46, %cst_26 {dimension_numbers = #tpu.dot_dimension_numbers<[1], [0], [0], [1], [0, 0, 1, 1], [], []>} : vector<8x8xbf16>, vector<8x8xbf16>, vector<8x8xf32> -> vector<8x8xf32>
    %62 = arith.truncf %61 : vector<8x8xf32> to vector<8x8xbf16>
    %63 = vector.extract_strided_slice %24 {offsets = [0, 16], sizes = [8, 8], strides = [1, 1]} : vector<8x32xbf16> to vector<8x8xbf16>
    %c0_27 = arith.constant 0 : index
    %c16 = arith.constant 16 : index
    %64 = vector.load %arg20[%c0_27, %c16] : memref<8x64xbf16, #tpu.memory_space<vmem>>, vector<8x8xbf16>
    %c0_28 = arith.constant 0 : index
    %c48 = arith.constant 48 : index
    %65 = vector.load %arg20[%c0_28, %c48] : memref<8x64xbf16, #tpu.memory_space<vmem>>, vector<8x8xbf16>
    %cst_29 = arith.constant dense<0.000000e+00> : vector<8x8xf32>
    %66 = tpu.matmul %63, %64, %cst_29 {dimension_numbers = #tpu.dot_dimension_numbers<[1], [1], [0], [0], [0, 0, 1, 0], [], []>} : vector<8x8xbf16>, vector<8x8xbf16>, vector<8x8xf32> -> vector<8x8xf32>
    %67 = vector.broadcast %16 : vector<1x8xf32> to vector<8x8xf32>
    %68 = arith.addf %66, %67 : vector<8x8xf32>
    %cst_30 = arith.constant dense<0xFF800000> : vector<8xf32>
    %69 = vector.multi_reduction <maximumf>, %68, %cst_30 [1] : vector<8x8xf32> to vector<8xf32>
    %70 = vector.shape_cast %69 : vector<8xf32> to vector<8x1xf32>
    %71 = vector.broadcast %70 : vector<8x1xf32> to vector<8x8xf32>
    %72 = arith.subf %68, %71 : vector<8x8xf32>
    %73 = math.exp %72 : vector<8x8xf32>
    %cst_31 = arith.constant dense<0.000000e+00> : vector<8xf32>
    %74 = vector.multi_reduction <add>, %73, %cst_31 [1] : vector<8x8xf32> to vector<8xf32>
    %75 = vector.shape_cast %74 : vector<8xf32> to vector<8x1xf32>
    %76 = tpu.reciprocal %75 {approx = true} : vector<8x1xf32> -> vector<8x1xf32>
    %77 = vector.broadcast %76 : vector<8x1xf32> to vector<8x8xf32>
    %78 = arith.mulf %73, %77 : vector<8x8xf32>
    %79 = arith.truncf %78 : vector<8x8xf32> to vector<8x8xbf16>
    %cst_32 = arith.constant dense<0.000000e+00> : vector<8x8xf32>
    %80 = tpu.matmul %79, %65, %cst_32 {dimension_numbers = #tpu.dot_dimension_numbers<[1], [0], [0], [1], [0, 0, 1, 1], [], []>} : vector<8x8xbf16>, vector<8x8xbf16>, vector<8x8xf32> -> vector<8x8xf32>
    %81 = arith.truncf %80 : vector<8x8xf32> to vector<8x8xbf16>
    %82 = vector.extract_strided_slice %24 {offsets = [0, 24], sizes = [8, 8], strides = [1, 1]} : vector<8x32xbf16> to vector<8x8xbf16>
    %c0_33 = arith.constant 0 : index
    %c24 = arith.constant 24 : index
    %83 = vector.load %arg20[%c0_33, %c24] : memref<8x64xbf16, #tpu.memory_space<vmem>>, vector<8x8xbf16>
    %c0_34 = arith.constant 0 : index
    %c56 = arith.constant 56 : index
    %84 = vector.load %arg20[%c0_34, %c56] : memref<8x64xbf16, #tpu.memory_space<vmem>>, vector<8x8xbf16>
    %cst_35 = arith.constant dense<0.000000e+00> : vector<8x8xf32>
    %85 = tpu.matmul %82, %83, %cst_35 {dimension_numbers = #tpu.dot_dimension_numbers<[1], [1], [0], [0], [0, 0, 1, 0], [], []>} : vector<8x8xbf16>, vector<8x8xbf16>, vector<8x8xf32> -> vector<8x8xf32>
    %86 = vector.broadcast %16 : vector<1x8xf32> to vector<8x8xf32>
    %87 = arith.addf %85, %86 : vector<8x8xf32>
    %cst_36 = arith.constant dense<0xFF800000> : vector<8xf32>
    %88 = vector.multi_reduction <maximumf>, %87, %cst_36 [1] : vector<8x8xf32> to vector<8xf32>
    %89 = vector.shape_cast %88 : vector<8xf32> to vector<8x1xf32>
    %90 = vector.broadcast %89 : vector<8x1xf32> to vector<8x8xf32>
    %91 = arith.subf %87, %90 : vector<8x8xf32>
    %92 = math.exp %91 : vector<8x8xf32>
    %cst_37 = arith.constant dense<0.000000e+00> : vector<8xf32>
    %93 = vector.multi_reduction <add>, %92, %cst_37 [1] : vector<8x8xf32> to vector<8xf32>
    %94 = vector.shape_cast %93 : vector<8xf32> to vector<8x1xf32>
    %95 = tpu.reciprocal %94 {approx = true} : vector<8x1xf32> -> vector<8x1xf32>
    %96 = vector.broadcast %95 : vector<8x1xf32> to vector<8x8xf32>
    %97 = arith.mulf %92, %96 : vector<8x8xf32>
    %98 = arith.truncf %97 : vector<8x8xf32> to vector<8x8xbf16>
    %cst_38 = arith.constant dense<0.000000e+00> : vector<8x8xf32>
    %99 = tpu.matmul %98, %84, %cst_38 {dimension_numbers = #tpu.dot_dimension_numbers<[1], [0], [0], [1], [0, 0, 1, 1], [], []>} : vector<8x8xbf16>, vector<8x8xbf16>, vector<8x8xf32> -> vector<8x8xf32>
    %100 = arith.truncf %99 : vector<8x8xf32> to vector<8x8xbf16>
    %101 = tpu.concatenate %43, %62, %81, %100 in 1 : vector<8x8xbf16>, vector<8x8xbf16>, vector<8x8xbf16>, vector<8x8xbf16> -> vector<8x32xbf16>
    %c0_39 = arith.constant 0 : index
    %c0_40 = arith.constant 0 : index
    %102 = vector.load %arg10[%c0_39, %c0_40] : memref<32x32xbf16, #tpu.memory_space<vmem>>, vector<32x32xbf16>
    %cst_41 = arith.constant dense<0.000000e+00> : vector<8x32xf32>
    %103 = tpu.matmul %101, %102, %cst_41 {dimension_numbers = #tpu.dot_dimension_numbers<[1], [0], [0], [1], [0, 0, 1, 1], [], []>} : vector<8x32xbf16>, vector<32x32xbf16>, vector<8x32xf32> -> vector<8x32xf32>
    %c0_42 = arith.constant 0 : index
    %c0_43 = arith.constant 0 : index
    %104 = vector.load %arg11[%c0_42, %c0_43] : memref<1x32xf32, #tpu.memory_space<vmem>>, vector<1x32xf32>
    %105 = vector.broadcast %104 : vector<1x32xf32> to vector<8x32xf32>
    %106 = arith.addf %103, %105 : vector<8x32xf32>
    %107 = arith.addf %7, %106 : vector<8x32xf32>
    %c0_44 = arith.constant 0 : index
    %c0_45 = arith.constant 0 : index
    %108 = vector.load %arg12[%c0_44, %c0_45] : memref<1x32xf32, #tpu.memory_space<vmem>>, vector<1x32xf32>
    %c0_46 = arith.constant 0 : index
    %c0_47 = arith.constant 0 : index
    %109 = vector.load %arg13[%c0_46, %c0_47] : memref<1x32xf32, #tpu.memory_space<vmem>>, vector<1x32xf32>
    %cst_48 = arith.constant dense<0.000000e+00> : vector<8xf32>
    %110 = vector.multi_reduction <add>, %107, %cst_48 [1] : vector<8x32xf32> to vector<8xf32>
    %111 = vector.shape_cast %110 : vector<8xf32> to vector<8x1xf32>
    %cst_49 = arith.constant 3.200000e+01 : f32
    %112 = vector.broadcast %cst_49 : f32 to vector<8x1xf32>
    %113 = arith.divf %111, %112 : vector<8x1xf32>
    %114 = vector.broadcast %113 : vector<8x1xf32> to vector<8x32xf32>
    %115 = arith.subf %107, %114 : vector<8x32xf32>
    %116 = arith.mulf %115, %115 : vector<8x32xf32>
    %cst_50 = arith.constant dense<0.000000e+00> : vector<8xf32>
    %117 = vector.multi_reduction <add>, %116, %cst_50 [1] : vector<8x32xf32> to vector<8xf32>
    %118 = vector.shape_cast %117 : vector<8xf32> to vector<8x1xf32>
    %cst_51 = arith.constant 3.200000e+01 : f32
    %119 = vector.broadcast %cst_51 : f32 to vector<8x1xf32>
    %120 = arith.divf %118, %119 : vector<8x1xf32>
    %121 = vector.broadcast %113 : vector<8x1xf32> to vector<8x32xf32>
    %122 = arith.subf %107, %121 : vector<8x32xf32>
    %cst_52 = arith.constant 9.99999974E-6 : f32
    %123 = vector.broadcast %cst_52 : f32 to vector<8x1xf32>
    %124 = arith.addf %120, %123 : vector<8x1xf32>
    %125 = math.rsqrt %124 : vector<8x1xf32>
    %126 = vector.broadcast %125 : vector<8x1xf32> to vector<8x32xf32>
    %127 = arith.mulf %122, %126 : vector<8x32xf32>
    %128 = vector.broadcast %108 : vector<1x32xf32> to vector<8x32xf32>
    %129 = arith.mulf %127, %128 : vector<8x32xf32>
    %130 = vector.broadcast %109 : vector<1x32xf32> to vector<8x32xf32>
    %131 = arith.addf %129, %130 : vector<8x32xf32>
    %132 = arith.truncf %131 : vector<8x32xf32> to vector<8x32xbf16>
    %c0_53 = arith.constant 0 : index
    %c0_54 = arith.constant 0 : index
    %133 = vector.load %arg14[%c0_53, %c0_54] : memref<32x64xbf16, #tpu.memory_space<vmem>>, vector<32x64xbf16>
    %cst_55 = arith.constant dense<0.000000e+00> : vector<8x64xf32>
    %134 = tpu.matmul %132, %133, %cst_55 {dimension_numbers = #tpu.dot_dimension_numbers<[1], [0], [0], [1], [0, 0, 1, 1], [], []>} : vector<8x32xbf16>, vector<32x64xbf16>, vector<8x64xf32> -> vector<8x64xf32>
    %c0_56 = arith.constant 0 : index
    %c0_57 = arith.constant 0 : index
    %135 = vector.load %arg15[%c0_56, %c0_57] : memref<1x64xf32, #tpu.memory_space<vmem>>, vector<1x64xf32>
    %136 = vector.broadcast %135 : vector<1x64xf32> to vector<8x64xf32>
    %137 = arith.addf %134, %136 : vector<8x64xf32>
    %cst_58 = arith.constant 0.000000e+00 : f32
    %138 = vector.broadcast %cst_58 : f32 to vector<8x64xf32>
    %139 = arith.maximumf %137, %138 : vector<8x64xf32>
    %140 = arith.truncf %139 : vector<8x64xf32> to vector<8x64xbf16>
    %c0_59 = arith.constant 0 : index
    %c0_60 = arith.constant 0 : index
    %141 = vector.load %arg16[%c0_59, %c0_60] : memref<64x32xbf16, #tpu.memory_space<vmem>>, vector<64x32xbf16>
    %cst_61 = arith.constant dense<0.000000e+00> : vector<8x32xf32>
    %142 = tpu.matmul %140, %141, %cst_61 {dimension_numbers = #tpu.dot_dimension_numbers<[1], [0], [0], [1], [0, 0, 1, 1], [], []>} : vector<8x64xbf16>, vector<64x32xbf16>, vector<8x32xf32> -> vector<8x32xf32>
    %c0_62 = arith.constant 0 : index
    %c0_63 = arith.constant 0 : index
    %143 = vector.load %arg17[%c0_62, %c0_63] : memref<1x32xf32, #tpu.memory_space<vmem>>, vector<1x32xf32>
    %144 = vector.broadcast %143 : vector<1x32xf32> to vector<8x32xf32>
    %145 = arith.addf %142, %144 : vector<8x32xf32>
    %146 = arith.addf %107, %145 : vector<8x32xf32>
    %c0_64 = arith.constant 0 : index
    %c0_65 = arith.constant 0 : index
    %c0_66 = arith.constant 0 : index
    %147 = vector.load %arg18[%c0_64, %c0_65, %c0_66] : memref<1x8x32xf32, #tpu.memory_space<vmem>>, vector<1x8x32xf32>
    %148 = vector.shape_cast %147 : vector<1x8x32xf32> to vector<8x32xf32>
    %149 = vector.shape_cast %146 : vector<8x32xf32> to vector<1x8x32xf32>
    tpu.vector_store %arg18[%c0_64, %c0_65, %c0_66], %149 {strides = array<i32>} : memref<1x8x32xf32, #tpu.memory_space<vmem>>, vector<1x8x32xf32>,
    return
  }
  func.func @transform_0(%arg0: i32, %arg1: i32) -> (i32, i32, i32) {
    %c0_i32 = arith.constant 0 : i32
    %c0_i32_0 = arith.constant 0 : i32
    %c0_i32_1 = arith.constant 0 : i32
    return %arg0, %c0_i32, %c0_i32_0 : i32, i32, i32
  }
  func.func @transform_1(%arg0: i32, %arg1: i32) -> (i32, i32, i32) {
    %c0_i32 = arith.constant 0 : i32
    %c0_i32_0 = arith.constant 0 : i32
    %c0_i32_1 = arith.constant 0 : i32
    return %arg0, %c0_i32, %c0_i32_0 : i32, i32, i32
  }
  func.func @transform_2(%arg0: i32, %arg1: i32) -> (i32, i32) {
    %c0_i32 = arith.constant 0 : i32
    %c0_i32_0 = arith.constant 0 : i32
    %c0_i32_1 = arith.constant 0 : i32
    return %c0_i32, %c0_i32_0 : i32, i32
  }
  func.func @transform_3(%arg0: i32, %arg1: i32) -> (i32, i32) {
    %c0_i32 = arith.constant 0 : i32
    %c0_i32_0 = arith.constant 0 : i32
    %c0_i32_1 = arith.constant 0 : i32
    return %c0_i32, %c0_i32_0 : i32, i32
  }
  func.func @transform_4(%arg0: i32, %arg1: i32) -> (i32, i32) {
    %c0_i32 = arith.constant 0 : i32
    %c0_i32_0 = arith.constant 0 : i32
    %c0_i32_1 = arith.constant 0 : i32
    return %c0_i32, %c0_i32_0 : i32, i32
  }
  func.func @transform_5(%arg0: i32, %arg1: i32) -> (i32, i32) {
    %c0_i32 = arith.constant 0 : i32
    %c0_i32_0 = arith.constant 0 : i32
    %c0_i32_1 = arith.constant 0 : i32
    return %c0_i32, %c0_i32_0 : i32, i32
  }
  func.func @transform_6(%arg0: i32, %arg1: i32) -> (i32, i32) {
    %c0_i32 = arith.constant 0 : i32
    %c0_i32_0 = arith.constant 0 : i32
    %c0_i32_1 = arith.constant 0 : i32
    return %c0_i32, %c0_i32_0 : i32, i32
  }
  func.func @transform_7(%arg0: i32, %arg1: i32) -> (i32, i32) {
    %c0_i32 = arith.constant 0 : i32
    %c0_i32_0 = arith.constant 0 : i32
    %c0_i32_1 = arith.constant 0 : i32
    return %c0_i32, %c0_i32_0 : i32, i32
  }
  func.func @transform_8(%arg0: i32, %arg1: i32) -> (i32, i32) {
    %c0_i32 = arith.constant 0 : i32
    %c0_i32_0 = arith.constant 0 : i32
    %c0_i32_1 = arith.constant 0 : i32
    return %c0_i32, %c0_i32_0 : i32, i32
  }
  func.func @transform_9(%arg0: i32, %arg1: i32) -> (i32, i32) {
    %c0_i32 = arith.constant 0 : i32
    %c0_i32_0 = arith.constant 0 : i32
    %c0_i32_1 = arith.constant 0 : i32
    return %c0_i32, %c0_i32_0 : i32, i32
  }
  func.func @transform_10(%arg0: i32, %arg1: i32) -> (i32, i32) {
    %c0_i32 = arith.constant 0 : i32
    %c0_i32_0 = arith.constant 0 : i32
    %c0_i32_1 = arith.constant 0 : i32
    return %c0_i32, %c0_i32_0 : i32, i32
  }
  func.func @transform_11(%arg0: i32, %arg1: i32) -> (i32, i32) {
    %c0_i32 = arith.constant 0 : i32
    %c0_i32_0 = arith.constant 0 : i32
    %c0_i32_1 = arith.constant 0 : i32
    return %c0_i32, %c0_i32_0 : i32, i32
  }
  func.func @transform_12(%arg0: i32, %arg1: i32) -> (i32, i32) {
    %c0_i32 = arith.constant 0 : i32
    %c0_i32_0 = arith.constant 0 : i32
    %c0_i32_1 = arith.constant 0 : i32
    return %c0_i32, %c0_i32_0 : i32, i32
  }
  func.func @transform_13(%arg0: i32, %arg1: i32) -> (i32, i32) {
    %c0_i32 = arith.constant 0 : i32
    %c0_i32_0 = arith.constant 0 : i32
    %c0_i32_1 = arith.constant 0 : i32
    return %c0_i32, %c0_i32_0 : i32, i32
  }
  func.func @transform_14(%arg0: i32, %arg1: i32) -> (i32, i32) {
    %c0_i32 = arith.constant 0 : i32
    %c0_i32_0 = arith.constant 0 : i32
    %c0_i32_1 = arith.constant 0 : i32
    return %c0_i32, %c0_i32_0 : i32, i32
  }
  func.func @transform_15(%arg0: i32, %arg1: i32) -> (i32, i32) {
    %c0_i32 = arith.constant 0 : i32
    %c0_i32_0 = arith.constant 0 : i32
    %c0_i32_1 = arith.constant 0 : i32
    return %c0_i32, %c0_i32_0 : i32, i32
  }
  func.func @transform_16(%arg0: i32, %arg1: i32) -> (i32, i32, i32) {
    %c0_i32 = arith.constant 0 : i32
    %c0_i32_0 = arith.constant 0 : i32
    return %arg0, %arg1, %c0_i32 : i32, i32, i32
  }
}

</mosaic_0001>

<llo_original>
// kernel: tpu_custom_call.1
$region0: #{tpu_custom_call.1}
  #allocation0 [shape = 'u32[]', space=smem, size = 0x4, offset = 0x4, fixed_abs, tag = 'smem constant byte address 0x4 - core index']
  #allocation1 [shape = 'u32[144,128]{1,0:T(1,128)}', space=vmem, size = 0x12000, scoped, tag = 'internal scratch']
  #allocation2 [shape = 'bf16[8,32]{1,0:T(8,128)(2,1)}', space=vmem, size = 0x800, scoped, tag = 'scratch operand']
  #allocation3 [shape = 'bf16[8,64]{1,0:T(8,128)(2,1)}', space=vmem, size = 0x800, scoped, tag = 'scratch operand']
  %s0 = inlined_call_operand.vmem [shape: f32[2,8,32], index: 0, kind: input, shape index: {}]
  %s1 = inlined_call_operand.vmem [shape: f32[2,1,8], index: 1, kind: input, shape index: {}]
  %s2 = inlined_call_operand.hbm [shape: f32[1,32], index: 2, kind: input, shape index: {}]
  %s3 = inlined_call_operand.hbm [shape: f32[1,32], index: 3, kind: input, shape index: {}]
  %s4 = inlined_call_operand.vmem [shape: bf16[32,32], index: 4, kind: input, shape index: {}]
  %s5 = inlined_call_operand.hbm [shape: f32[1,32], index: 5, kind: input, shape index: {}]
  %s6 = inlined_call_operand.vmem [shape: bf16[32,64], index: 6, kind: input, shape index: {}]
  %s7 = inlined_call_operand.hbm [shape: f32[1,64], index: 7, kind: input, shape index: {}]
  %s8 = inlined_call_operand.hbm [shape: bf16[32,32], index: 8, kind: input, shape index: {}]
  %s9 = inlined_call_operand.hbm [shape: f32[1,32], index: 9, kind: input, shape index: {}]
  %s10 = inlined_call_operand.vmem [shape: f32[1,32], index: 10, kind: input, shape index: {}]
  %s11 = inlined_call_operand.vmem [shape: f32[1,32], index: 11, kind: input, shape index: {}]
  %s12 = inlined_call_operand.vmem [shape: bf16[32,64], index: 12, kind: input, shape index: {}]
  %s13 = inlined_call_operand.vmem [shape: f32[1,64], index: 13, kind: input, shape index: {}]
  %s14 = inlined_call_operand.vmem [shape: bf16[64,32], index: 14, kind: input, shape index: {}]
  %s15 = inlined_call_operand.vmem [shape: f32[1,32], index: 15, kind: input, shape index: {}]
  %s16 = inlined_call_operand.hbm [shape: f32[2,8,32], index: 16, kind: output, shape index: {}]
  %s17 = sld [smem:[#allocation0]]
  $region125: #{tpu_custom_call.1} parent=0
    _
  %s19 = ssub.s32 1, %s17
  %s20 = scalar_select 0, %s19, %s17
  $region1: #{tpu_custom_call.1} parent=0
    #allocation4 [shape = 'u8[512]{0}', space=vmem, size = 0x400, scoped, tag = 'input window, operand 2, single buffered']
    #allocation5 [shape = 's32[2]{0}', space=sflag, size = 0x8, scoped, tag = 'scoped memory for tpu_custom_call.1']
    #allocation6 [shape = 's32[2]{0}', space=sflag, size = 0x8, scoped, tag = 'scoped memory for tpu_custom_call.1']
    #allocation7 [shape = 'u8[512]{0}', space=vmem, size = 0x400, scoped, tag = 'input window, operand 3, single buffered']
    #allocation8 [shape = 's32[1]{0}', space=sflag, size = 0x4, scoped, tag = 'scoped memory for tpu_custom_call.1']
    #allocation9 [shape = 'u8[512]{0}', space=vmem, size = 0x400, scoped, tag = 'input window, operand 5, single buffered']
    #allocation10 [shape = 'u8[512]{0}', space=vmem, size = 0x400, scoped, tag = 'input window, operand 7, single buffered']
    #allocation11 [shape = 's32[1]{0}', space=sflag, size = 0x4, scoped, tag = 'scoped memory for tpu_custom_call.1']
    #allocation12 [shape = 'u8[8192]{0}', space=vmem, size = 0x2000, scoped, tag = 'input window, operand 8, single buffered']
    #allocation13 [shape = 'u8[512]{0}', space=vmem, size = 0x400, scoped, tag = 'input window, operand 9, single buffered']
    #allocation14 [shape = 's32[1]{0}', space=sflag, size = 0x4, scoped, tag = 'scoped memory for tpu_custom_call.1']
    #allocation15 [shape = 'u8[8192]{0}', space=vmem, size = 0x2000, scoped, tag = 'output window, operand 0']
    %21 = vsyncpa [#allocation5], 0
    %22 = vsyncpa [#allocation8], 0
    %23 = vsyncpa [#allocation11], 0
    %24 = vsyncpa [#allocation14], 0
    %25 = vsyncpa [#allocation6], 0
    %s26 = scalar_lea.sflag [#allocation6], 1
    %27 = vsyncpa %s26, 0
    loop: start=0, step=1, limit=4
    $region2: #{tpu_custom_call.1} parent=1 // loop_pre_header
      _
    $region3: #{tpu_custom_call.1} parent=1 // loop_header
      %s29 = sphi 0, %s33
      %p30 = scmp.ge.s32.totalorder %s29, 4
      %s36 = sphi 0, %s48
      %s37 = sphi 0, %s44
      %s38 = sphi 0, %s36
      %s39 = sphi 0, %s37
      %s40 = sphi 0, %s38
      %s41 = sphi 0, %s39
      %s51 = sphi 0, %s53
      %s54 = sphi 0, %s51
      %s55 = sphi 0, %s54
      %s71 = sphi 0, %s55
      %s77 = sphi 0, %s79
      %s80 = sphi 0, %s77
      %s81 = sphi 0, %s80
      %s97 = sphi 0, %s81
      %s101 = sphi 0, %s101
      %s103 = sphi 0, %s101
      %s104 = sphi 0, %s103
      %s118 = sphi 0, %s104
      %s122 = sphi 0, %s122
      %s124 = sphi 0, %s122
      %s125 = sphi 0, %s124
      %s139 = sphi 0, %s125
      %s143 = sphi 0, %s143
      %s145 = sphi 0, %s143
      %s146 = sphi 0, %s145
      %s160 = sphi 0, %s146
      %s164 = sphi 0, %s164
      %s166 = sphi 0, %s164
      %s167 = sphi 0, %s166
      %s181 = sphi 0, %s167
      %s185 = sphi 0, %s185
      %s187 = sphi 0, %s185
      %s188 = sphi 0, %s187
      %s202 = sphi 0, %s188
      %s206 = sphi 0, %s206
      %s208 = sphi 0, %s206
      %s209 = sphi 0, %s208
      %s223 = sphi 0, %s209
      %s227 = sphi 0, %s227
      %s229 = sphi 0, %s227
      %s230 = sphi 0, %s229
      %s244 = sphi 0, %s230
      %s248 = sphi 0, %s248
      %s250 = sphi 0, %s248
      %s251 = sphi 0, %s250
      %s265 = sphi 0, %s251
      %s269 = sphi 0, %s269
      %s271 = sphi 0, %s269
      %s272 = sphi 0, %s271
      %s286 = sphi 0, %s272
      %s290 = sphi 0, %s290
      %s292 = sphi 0, %s290
      %s293 = sphi 0, %s292
      %s307 = sphi 0, %s293
      %s311 = sphi 0, %s311
      %s313 = sphi 0, %s311
      %s314 = sphi 0, %s313
      %s328 = sphi 0, %s314
      %s332 = sphi 0, %s332
      %s334 = sphi 0, %s332
      %s335 = sphi 0, %s334
      %s349 = sphi 0, %s335
      %s353 = sphi 0, %s353
      %s355 = sphi 0, %s353
      %s356 = sphi 0, %s355
      %s370 = sphi 0, %s356
      %s374 = sphi 0, %s374
      %s376 = sphi 0, %s374
      %s377 = sphi 0, %s376
      %s391 = sphi 0, %s377
      %s399 = sphi 0, %s401
      %s402 = sphi 0, %s399
      %s403 = sphi 0, %s402
      %s419 = sphi 0, %s403
    $region4: #{tpu_custom_call.1} parent=1 // loop_header_branch
      %32 = sbr.rel (%p30) target = $region8
    $region5: #{tpu_custom_call.1} parent=1 // loop_body
      %s34 = ssub.s32 %s29, 1
      %s35 = ssub.s32 %s29, 2
      %s42 = sadd.s32 1, %s37
      %p43 = scmp.ge.s32.totalorder %s42, 1
      %s44 = scalar_select %p43, 0, %s42
      %s45 = sadd.s32 1, %s36
      %s46 = scalar_select %p43, %s45, %s36
      %p47 = scmp.ge.s32.totalorder %s46, 2
      %s48 = scalar_select %p47, 0, %s46
      %s49 = ssub.s32 %s36, %s48
      %p50 = scmp.eq.s32.totalorder %s49, 0
      %s52 = sadd.s32 %s51, 1
      %s53 = scalar_select %p50, %s51, %s52
      %p56 = pneg %p50
      %p57 = scmp.eq.s32.totalorder %s29, 1
      %p58 = por %p56, %p57
      %p59 = scmp.ne.s32.totalorder %s51, %s54
      %p60 = scmp.eq.s32.totalorder %s29, 0
      %p61 = por %p59, %p60
      %p62 = scmp.ne.s32.totalorder %s51, %s54
      %p63 = scmp.eq.s32.totalorder %s34, 1
      %p64 = por %p62, %p63
      %p65 = scmp.ne.s32.totalorder %s54, %s55
      %p66 = scmp.eq.s32.totalorder %s34, 0
      %p67 = por %p65, %p66
      %p68 = scmp.ne.s32.totalorder %s54, %s55
      %p69 = scmp.eq.s32.totalorder %s35, 1
      %p70 = por %p68, %p69
      %p72 = scmp.ne.s32.totalorder %s55, %s71
      %p73 = scmp.eq.s32.totalorder %s35, 0
      %p74 = por %p72, %p73
      %s75 = ssub.s32 %s36, %s48
      %p76 = scmp.eq.s32.totalorder %s75, 0
      %s78 = sadd.s32 %s77, 1
      %s79 = scalar_select %p76, %s77, %s78
      %p82 = pneg %p76
      %p83 = scmp.eq.s32.totalorder %s29, 1
      %p84 = por %p82, %p83
      %p85 = scmp.ne.s32.totalorder %s77, %s80
      %p86 = scmp.eq.s32.totalorder %s29, 0
      %p87 = por %p85, %p86
      %p88 = scmp.ne.s32.totalorder %s77, %s80
      %p89 = scmp.eq.s32.totalorder %s34, 1
      %p90 = por %p88, %p89
      %p91 = scmp.ne.s32.totalorder %s80, %s81
      %p92 = scmp.eq.s32.totalorder %s34, 0
      %p93 = por %p91, %p92
      %p94 = scmp.ne.s32.totalorder %s80, %s81
      %p95 = scmp.eq.s32.totalorder %s35, 1
      %p96 = por %p94, %p95
      %p98 = scmp.ne.s32.totalorder %s81, %s97
      %p99 = scmp.eq.s32.totalorder %s35, 0
      %p100 = por %p98, %p99
      %s102 = sadd.s32 %s101, 1
      %p105 = scmp.eq.s32.totalorder %s29, 1
      %p106 = scmp.ne.s32.totalorder %s101, %s103
      %p107 = scmp.eq.s32.totalorder %s29, 0
      %p108 = por %p106, %p107
      %p109 = scmp.ne.s32.totalorder %s101, %s103
      %p110 = scmp.eq.s32.totalorder %s34, 1
      %p111 = por %p109, %p110
      %p112 = scmp.ne.s32.totalorder %s103, %s104
      %p113 = scmp.eq.s32.totalorder %s34, 0
      %p114 = por %p112, %p113
      %p115 = scmp.ne.s32.totalorder %s103, %s104
      %p116 = scmp.eq.s32.totalorder %s35, 1
      %p117 = por %p115, %p116
      %p119 = scmp.ne.s32.totalorder %s104, %s118
      %p120 = scmp.eq.s32.totalorder %s35, 0
      %p121 = por %p119, %p120
      %s123 = sadd.s32 %s122, 1
      %p126 = scmp.eq.s32.totalorder %s29, 1
      %p127 = scmp.ne.s32.totalorder %s122, %s124
      %p128 = scmp.eq.s32.totalorder %s29, 0
      %p129 = por %p127, %p128
      %p130 = scmp.ne.s32.totalorder %s122, %s124
      %p131 = scmp.eq.s32.totalorder %s34, 1
      %p132 = por %p130, %p131
      %p133 = scmp.ne.s32.totalorder %s124, %s125
      %p134 = scmp.eq.s32.totalorder %s34, 0
      %p135 = por %p133, %p134
      %p136 = scmp.ne.s32.totalorder %s124, %s125
      %p137 = scmp.eq.s32.totalorder %s35, 1
      %p138 = por %p136, %p137
      %p140 = scmp.ne.s32.totalorder %s125, %s139
      %p141 = scmp.eq.s32.totalorder %s35, 0
      %p142 = por %p140, %p141
      %s144 = sadd.s32 %s143, 1
      %p147 = scmp.eq.s32.totalorder %s29, 1
      %p148 = scmp.ne.s32.totalorder %s143, %s145
      %p149 = scmp.eq.s32.totalorder %s29, 0
      %p150 = por %p148, %p149
      %p151 = scmp.ne.s32.totalorder %s143, %s145
      %p152 = scmp.eq.s32.totalorder %s34, 1
      %p153 = por %p151, %p152
      %p154 = scmp.ne.s32.totalorder %s145, %s146
      %p155 = scmp.eq.s32.totalorder %s34, 0
      %p156 = por %p154, %p155
      %p157 = scmp.ne.s32.totalorder %s145, %s146
      %p158 = scmp.eq.s32.totalorder %s35, 1
      %p159 = por %p157, %p158
      %p161 = scmp.ne.s32.totalorder %s146, %s160
      %p162 = scmp.eq.s32.totalorder %s35, 0
      %p163 = por %p161, %p162
      %s165 = sadd.s32 %s164, 1
      %p168 = scmp.eq.s32.totalorder %s29, 1
      %p169 = scmp.ne.s32.totalorder %s164, %s166
      %p170 = scmp.eq.s32.totalorder %s29, 0
      %p171 = por %p169, %p170
      %p172 = scmp.ne.s32.totalorder %s164, %s166
      %p173 = scmp.eq.s32.totalorder %s34, 1
      %p174 = por %p172, %p173
      %p175 = scmp.ne.s32.totalorder %s166, %s167
      %p176 = scmp.eq.s32.totalorder %s34, 0
      %p177 = por %p175, %p176
      %p178 = scmp.ne.s32.totalorder %s166, %s167
      %p179 = scmp.eq.s32.totalorder %s35, 1
      %p180 = por %p178, %p179
      %p182 = scmp.ne.s32.totalorder %s167, %s181
      %p183 = scmp.eq.s32.totalorder %s35, 0
      %p184 = por %p182, %p183
      %s186 = sadd.s32 %s185, 1
      %p189 = scmp.eq.s32.totalorder %s29, 1
      %p190 = scmp.ne.s32.totalorder %s185, %s187
      %p191 = scmp.eq.s32.totalorder %s29, 0
      %p192 = por %p190, %p191
      %p193 = scmp.ne.s32.totalorder %s185, %s187
      %p194 = scmp.eq.s32.totalorder %s34, 1
      %p195 = por %p193, %p194
      %p196 = scmp.ne.s32.totalorder %s187, %s188
      %p197 = scmp.eq.s32.totalorder %s34, 0
      %p198 = por %p196, %p197
      %p199 = scmp.ne.s32.totalorder %s187, %s188
      %p200 = scmp.eq.s32.totalorder %s35, 1
      %p201 = por %p199, %p200
      %p203 = scmp.ne.s32.totalorder %s188, %s202
      %p204 = scmp.eq.s32.totalorder %s35, 0
      %p205 = por %p203, %p204
      %s207 = sadd.s32 %s206, 1
      %p210 = scmp.eq.s32.totalorder %s29, 1
      %p211 = scmp.ne.s32.totalorder %s206, %s208
      %p212 = scmp.eq.s32.totalorder %s29, 0
      %p213 = por %p211, %p212
      %p214 = scmp.ne.s32.totalorder %s206, %s208
      %p215 = scmp.eq.s32.totalorder %s34, 1
      %p216 = por %p214, %p215
      %p217 = scmp.ne.s32.totalorder %s208, %s209
      %p218 = scmp.eq.s32.totalorder %s34, 0
      %p219 = por %p217, %p218
      %p220 = scmp.ne.s32.totalorder %s208, %s209
      %p221 = scmp.eq.s32.totalorder %s35, 1
      %p222 = por %p220, %p221
      %p224 = scmp.ne.s32.totalorder %s209, %s223
      %p225 = scmp.eq.s32.totalorder %s35, 0
      %p226 = por %p224, %p225
      %s228 = sadd.s32 %s227, 1
      %p231 = scmp.eq.s32.totalorder %s29, 1
      %p232 = scmp.ne.s32.totalorder %s227, %s229
      %p233 = scmp.eq.s32.totalorder %s29, 0
      %p234 = por %p232, %p233
      %p235 = scmp.ne.s32.totalorder %s227, %s229
      %p236 = scmp.eq.s32.totalorder %s34, 1
      %p237 = por %p235, %p236
      %p238 = scmp.ne.s32.totalorder %s229, %s230
      %p239 = scmp.eq.s32.totalorder %s34, 0
      %p240 = por %p238, %p239
      %p241 = scmp.ne.s32.totalorder %s229, %s230
      %p242 = scmp.eq.s32.totalorder %s35, 1
      %p243 = por %p241, %p242
      %p245 = scmp.ne.s32.totalorder %s230, %s244
      %p246 = scmp.eq.s32.totalorder %s35, 0
      %p247 = por %p245, %p246
      %s249 = sadd.s32 %s248, 1
      %p252 = scmp.eq.s32.totalorder %s29, 1
      %p253 = scmp.ne.s32.totalorder %s248, %s250
      %p254 = scmp.eq.s32.totalorder %s29, 0
      %p255 = por %p253, %p254
      %p256 = scmp.ne.s32.totalorder %s248, %s250
      %p257 = scmp.eq.s32.totalorder %s34, 1
      %p258 = por %p256, %p257
      %p259 = scmp.ne.s32.totalorder %s250, %s251
      %p260 = scmp.eq.s32.totalorder %s34, 0
      %p261 = por %p259, %p260
      %p262 = scmp.ne.s32.totalorder %s250, %s251
      %p263 = scmp.eq.s32.totalorder %s35, 1
      %p264 = por %p262, %p263
      %p266 = scmp.ne.s32.totalorder %s251, %s265
      %p267 = scmp.eq.s32.totalorder %s35, 0
      %p268 = por %p266, %p267
      %s270 = sadd.s32 %s269, 1
      %p273 = scmp.eq.s32.totalorder %s29, 1
      %p274 = scmp.ne.s32.totalorder %s269, %s271
      %p275 = scmp.eq.s32.totalorder %s29, 0
      %p276 = por %p274, %p275
      %p277 = scmp.ne.s32.totalorder %s269, %s271
      %p278 = scmp.eq.s32.totalorder %s34, 1
      %p279 = por %p277, %p278
      %p280 = scmp.ne.s32.totalorder %s271, %s272
      %p281 = scmp.eq.s32.totalorder %s34, 0
      %p282 = por %p280, %p281
      %p283 = scmp.ne.s32.totalorder %s271, %s272
      %p284 = scmp.eq.s32.totalorder %s35, 1
      %p285 = por %p283, %p284
      %p287 = scmp.ne.s32.totalorder %s272, %s286
      %p288 = scmp.eq.s32.totalorder %s35, 0
      %p289 = por %p287, %p288
      %s291 = sadd.s32 %s290, 1
      %p294 = scmp.eq.s32.totalorder %s29, 1
      %p295 = scmp.ne.s32.totalorder %s290, %s292
      %p296 = scmp.eq.s32.totalorder %s29, 0
      %p297 = por %p295, %p296
      %p298 = scmp.ne.s32.totalorder %s290, %s292
      %p299 = scmp.eq.s32.totalorder %s34, 1
      %p300 = por %p298, %p299
      %p301 = scmp.ne.s32.totalorder %s292, %s293
      %p302 = scmp.eq.s32.totalorder %s34, 0
      %p303 = por %p301, %p302
      %p304 = scmp.ne.s32.totalorder %s292, %s293
      %p305 = scmp.eq.s32.totalorder %s35, 1
      %p306 = por %p304, %p305
      %p308 = scmp.ne.s32.totalorder %s293, %s307
      %p309 = scmp.eq.s32.totalorder %s35, 0
      %p310 = por %p308, %p309
      %s312 = sadd.s32 %s311, 1
      %p315 = scmp.eq.s32.totalorder %s29, 1
      %p316 = scmp.ne.s32.totalorder %s311, %s313
      %p317 = scmp.eq.s32.totalorder %s29, 0
      %p318 = por %p316, %p317
      %p319 = scmp.ne.s32.totalorder %s311, %s313
      %p320 = scmp.eq.s32.totalorder %s34, 1
      %p321 = por %p319, %p320
      %p322 = scmp.ne.s32.totalorder %s313, %s314
      %p323 = scmp.eq.s32.totalorder %s34, 0
      %p324 = por %p322, %p323
      %p325 = scmp.ne.s32.totalorder %s313, %s314
      %p326 = scmp.eq.s32.totalorder %s35, 1
      %p327 = por %p325, %p326
      %p329 = scmp.ne.s32.totalorder %s314, %s328
      %p330 = scmp.eq.s32.totalorder %s35, 0
      %p331 = por %p329, %p330
      %s333 = sadd.s32 %s332, 1
      %p336 = scmp.eq.s32.totalorder %s29, 1
      %p337 = scmp.ne.s32.totalorder %s332, %s334
      %p338 = scmp.eq.s32.totalorder %s29, 0
      %p339 = por %p337, %p338
      %p340 = scmp.ne.s32.totalorder %s332, %s334
      %p341 = scmp.eq.s32.totalorder %s34, 1
      %p342 = por %p340, %p341
      %p343 = scmp.ne.s32.totalorder %s334, %s335
      %p344 = scmp.eq.s32.totalorder %s34, 0
      %p345 = por %p343, %p344
      %p346 = scmp.ne.s32.totalorder %s334, %s335
      %p347 = scmp.eq.s32.totalorder %s35, 1
      %p348 = por %p346, %p347
      %p350 = scmp.ne.s32.totalorder %s335, %s349
      %p351 = scmp.eq.s32.totalorder %s35, 0
      %p352 = por %p350, %p351
      %s354 = sadd.s32 %s353, 1
      %p357 = scmp.eq.s32.totalorder %s29, 1
      %p358 = scmp.ne.s32.totalorder %s353, %s355
      %p359 = scmp.eq.s32.totalorder %s29, 0
      %p360 = por %p358, %p359
      %p361 = scmp.ne.s32.totalorder %s353, %s355
      %p362 = scmp.eq.s32.totalorder %s34, 1
      %p363 = por %p361, %p362
      %p364 = scmp.ne.s32.totalorder %s355, %s356
      %p365 = scmp.eq.s32.totalorder %s34, 0
      %p366 = por %p364, %p365
      %p367 = scmp.ne.s32.totalorder %s355, %s356
      %p368 = scmp.eq.s32.totalorder %s35, 1
      %p369 = por %p367, %p368
      %p371 = scmp.ne.s32.totalorder %s356, %s370
      %p372 = scmp.eq.s32.totalorder %s35, 0
      %p373 = por %p371, %p372
      %s375 = sadd.s32 %s374, 1
      %p378 = scmp.eq.s32.totalorder %s29, 1
      %p379 = scmp.ne.s32.totalorder %s374, %s376
      %p380 = scmp.eq.s32.totalorder %s29, 0
      %p381 = por %p379, %p380
      %p382 = scmp.ne.s32.totalorder %s374, %s376
      %p383 = scmp.eq.s32.totalorder %s34, 1
      %p384 = por %p382, %p383
      %p385 = scmp.ne.s32.totalorder %s376, %s377
      %p386 = scmp.eq.s32.totalorder %s34, 0
      %p387 = por %p385, %p386
      %p388 = scmp.ne.s32.totalorder %s376, %s377
      %p389 = scmp.eq.s32.totalorder %s35, 1
      %p390 = por %p388, %p389
      %p392 = scmp.ne.s32.totalorder %s377, %s391
      %p393 = scmp.eq.s32.totalorder %s35, 0
      %p394 = por %p392, %p393
      %s395 = ssub.s32 %s36, %s48
      %s396 = ssub.s32 %s37, %s44
      %s397 = sor.u32 %s395, %s396
      %p398 = scmp.eq.s32.totalorder %s397, 0
      %s400 = sadd.s32 %s399, 1
      %s401 = scalar_select %p398, %s399, %s400
      %p404 = pneg %p398
      %p405 = scmp.eq.s32.totalorder %s29, 1
      %p406 = por %p404, %p405
      %p407 = scmp.ne.s32.totalorder %s399, %s402
      %p408 = scmp.eq.s32.totalorder %s29, 0
      %p409 = por %p407, %p408
      %p410 = scmp.ne.s32.totalorder %s399, %s402
      %p411 = scmp.eq.s32.totalorder %s34, 1
      %p412 = por %p410, %p411
      %p413 = scmp.ne.s32.totalorder %s402, %s403
      %p414 = scmp.eq.s32.totalorder %s34, 0
      %p415 = por %p413, %p414
      %p416 = scmp.ne.s32.totalorder %s402, %s403
      %p417 = scmp.eq.s32.totalorder %s35, 1
      %p418 = por %p416, %p417
      %p420 = scmp.ne.s32.totalorder %s403, %s419
      %p421 = scmp.eq.s32.totalorder %s35, 0
      %p422 = por %p420, %p421
      %p423 = scmp.le.s32.totalorder 1, %s29
      %p424 = scmp.lt.s32.totalorder %s29, 3
      %p425 = pnand %p423, %p424
      %p426 = pneg %p425
      // Predicated region
      $region9: #{tpu_custom_call.1} parent=5 // pred_check
        _
      $region10: #{tpu_custom_call.1} parent=5 // pred_check_branch
        %428 = sbr.rel (%p425) target = $region12
      $region11: #{tpu_custom_call.1} parent=5 // pred_region
        %s429 = ssub.s32 %s29, 1
        // Predicated region
        $region13: #{tpu_custom_call.1} parent=11 // pred_check
          %p430 = pneg %p114
        $region14: #{tpu_custom_call.1} parent=11 // pred_check_branch
          %432 = sbr.rel (%p430) target = $region16
        $region15: #{tpu_custom_call.1} parent=11 // pred_region
          %s434 = ssub.s32 16, 16
          %435 = vsyncadd [#allocation5], %s434
          %s437 = sshll.u32 [#allocation4], 4
          %s438 = int_to_ptr.vmem [resolvable:$true] %s437
          %440 = dma.hbm_to_vmem [thread:$0]  %s2, 16, %s438, [#allocation5]
        $region16: #{tpu_custom_call.1} parent=11 // pred_fallthru
          _
        // Predicated region
        $region17: #{tpu_custom_call.1} parent=11 // pred_check
          %p441 = pneg %p135
        $region18: #{tpu_custom_call.1} parent=11 // pred_check_branch
          %443 = sbr.rel (%p441) target = $region20
        $region19: #{tpu_custom_call.1} parent=11 // pred_region
          %s445 = ssub.s32 16, 16
          %446 = vsyncadd [#allocation8], %s445
          %s448 = sshll.u32 [#allocation7], 4
          %s449 = int_to_ptr.vmem [resolvable:$true] %s448
          %451 = dma.hbm_to_vmem [thread:$0]  %s3, 16, %s449, [#allocation8]
        $region20: #{tpu_custom_call.1} parent=11 // pred_fallthru
          _
        // Predicated region
        $region21: #{tpu_custom_call.1} parent=11 // pred_check
          %p452 = pneg %p156
        $region22: #{tpu_custom_call.1} parent=11 // pred_check_branch
          %454 = sbr.rel (%p452) target = $region24
        $region23: #{tpu_custom_call.1} parent=11 // pred_region
          _
        $region24: #{tpu_custom_call.1} parent=11 // pred_fallthru
          _
        // Predicated region
        $region25: #{tpu_custom_call.1} parent=11 // pred_check
          %p455 = pneg %p177
        $region26: #{tpu_custom_call.1} parent=11 // pred_check_branch
          %457 = sbr.rel (%p455) target = $region28
        $region27: #{tpu_custom_call.1} parent=11 // pred_region
          %s459 = ssub.s32 16, 16
          %460 = vsyncadd [#allocation8], %s459
          %s462 = sshll.u32 [#allocation9], 4
          %s463 = int_to_ptr.vmem [resolvable:$true] %s462
          %465 = dma.hbm_to_vmem [thread:$0]  %s5, 16, %s463, [#allocation8]
        $region28: #{tpu_custom_call.1} parent=11 // pred_fallthru
          _
        // Predicated region
        $region29: #{tpu_custom_call.1} parent=11 // pred_check
          %p466 = pneg %p198
        $region30: #{tpu_custom_call.1} parent=11 // pred_check_branch
          %468 = sbr.rel (%p466) target = $region32
        $region31: #{tpu_custom_call.1} parent=11 // pred_region
          _
        $region32: #{tpu_custom_call.1} parent=11 // pred_fallthru
          _
        // Predicated region
        $region33: #{tpu_custom_call.1} parent=11 // pred_check
          %p469 = pneg %p219
        $region34: #{tpu_custom_call.1} parent=11 // pred_check_branch
          %471 = sbr.rel (%p469) target = $region36
        $region35: #{tpu_custom_call.1} parent=11 // pred_region
          %s473 = ssub.s32 16, 16
          %474 = vsyncadd [#allocation11], %s473
          %s476 = sshll.u32 [#allocation10], 4
          %s477 = int_to_ptr.vmem [resolvable:$true] %s476
          %479 = dma.hbm_to_vmem [thread:$0]  %s7, 16, %s477, [#allocation11]
        $region36: #{tpu_custom_call.1} parent=11 // pred_fallthru
          _
        // Predicated region
        $region37: #{tpu_custom_call.1} parent=11 // pred_check
          %p480 = pneg %p240
        $region38: #{tpu_custom_call.1} parent=11 // pred_check_branch
          %482 = sbr.rel (%p480) target = $region40
        $region39: #{tpu_custom_call.1} parent=11 // pred_region
          %s484 = ssub.s32 256, 256
          %485 = vsyncadd [#allocation11], %s484
          %s486 = sshll.u32 [#allocation12], 4
          %s487 = int_to_ptr.vmem [resolvable:$true] %s486
          %492 = dma.hbm_to_vmem [thread:$0]  %s8, 256, %s487, [#allocation11], 64, 64, 4
        $region40: #{tpu_custom_call.1} parent=11 // pred_fallthru
          _
        // Predicated region
        $region41: #{tpu_custom_call.1} parent=11 // pred_check
          %p493 = pneg %p261
        $region42: #{tpu_custom_call.1} parent=11 // pred_check_branch
          %495 = sbr.rel (%p493) target = $region44
        $region43: #{tpu_custom_call.1} parent=11 // pred_region
          %s497 = ssub.s32 16, 16
          %498 = vsyncadd [#allocation14], %s497
          %s500 = sshll.u32 [#allocation13], 4
          %s501 = int_to_ptr.vmem [resolvable:$true] %s500
          %503 = dma.hbm_to_vmem [thread:$0]  %s9, 16, %s501, [#allocation14]
        $region44: #{tpu_custom_call.1} parent=11 // pred_fallthru
          _
        // Predicated region
        $region45: #{tpu_custom_call.1} parent=11 // pred_check
          %p504 = pneg %p282
        $region46: #{tpu_custom_call.1} parent=11 // pred_check_branch
          %506 = sbr.rel (%p504) target = $region48
        $region47: #{tpu_custom_call.1} parent=11 // pred_region
          _
        $region48: #{tpu_custom_call.1} parent=11 // pred_fallthru
          _
        // Predicated region
        $region49: #{tpu_custom_call.1} parent=11 // pred_check
          %p507 = pneg %p303
        $region50: #{tpu_custom_call.1} parent=11 // pred_check_branch
          %509 = sbr.rel (%p507) target = $region52
        $region51: #{tpu_custom_call.1} parent=11 // pred_region
          _
        $region52: #{tpu_custom_call.1} parent=11 // pred_fallthru
          _
        // Predicated region
        $region53: #{tpu_custom_call.1} parent=11 // pred_check
          %p510 = pneg %p324
        $region54: #{tpu_custom_call.1} parent=11 // pred_check_branch
          %512 = sbr.rel (%p510) target = $region56
        $region55: #{tpu_custom_call.1} parent=11 // pred_region
          _
        $region56: #{tpu_custom_call.1} parent=11 // pred_fallthru
          _
        // Predicated region
        $region57: #{tpu_custom_call.1} parent=11 // pred_check
          %p513 = pneg %p345
        $region58: #{tpu_custom_call.1} parent=11 // pred_check_branch
          %515 = sbr.rel (%p513) target = $region60
        $region59: #{tpu_custom_call.1} parent=11 // pred_region
          _
        $region60: #{tpu_custom_call.1} parent=11 // pred_fallthru
          _
        // Predicated region
        $region61: #{tpu_custom_call.1} parent=11 // pred_check
          %p516 = pneg %p366
        $region62: #{tpu_custom_call.1} parent=11 // pred_check_branch
          %518 = sbr.rel (%p516) target = $region64
        $region63: #{tpu_custom_call.1} parent=11 // pred_region
          _
        $region64: #{tpu_custom_call.1} parent=11 // pred_fallthru
          _
        // Predicated region
        $region65: #{tpu_custom_call.1} parent=11 // pred_check
          %p519 = pneg %p387
        $region66: #{tpu_custom_call.1} parent=11 // pred_check_branch
          %521 = sbr.rel (%p519) target = $region68
        $region67: #{tpu_custom_call.1} parent=11 // pred_region
          _
        $region68: #{tpu_custom_call.1} parent=11 // pred_fallthru
          _
      $region12: #{tpu_custom_call.1} parent=5 // pred_fallthru
        _
      %p522 = scmp.lt.s32.totalorder %s29, 2
      // Predicated region
      $region69: #{tpu_custom_call.1} parent=5 // pred_check
        %p523 = pneg %p522
      $region70: #{tpu_custom_call.1} parent=5 // pred_check_branch
        %525 = sbr.rel (%p523) target = $region72
      $region71: #{tpu_custom_call.1} parent=5 // pred_region
        // Predicated region
        $region73: #{tpu_custom_call.1} parent=71 // pred_check
          %p526 = pneg %p61
        $region74: #{tpu_custom_call.1} parent=71 // pred_check_branch
          %528 = sbr.rel (%p526) target = $region76
        $region75: #{tpu_custom_call.1} parent=71 // pred_region
          %p529 = scmp.lt.s32.totalorder %s36, 1
          %s530 = scalar_select %p529, %s36, 1
          %s531 = smul.addr %s530, 8
          %s532 = scalar_lea.vmem %s0, %s531
        $region76: #{tpu_custom_call.1} parent=71 // pred_fallthru
          _
        // Predicated region
        $region77: #{tpu_custom_call.1} parent=71 // pred_check
          %p533 = pneg %p87
        $region78: #{tpu_custom_call.1} parent=71 // pred_check_branch
          %535 = sbr.rel (%p533) target = $region80
        $region79: #{tpu_custom_call.1} parent=71 // pred_region
          %p536 = scmp.lt.s32.totalorder %s36, 1
          %s537 = scalar_select %p536, %s36, 1
          %s538 = scalar_lea.vmem %s1, %s537
        $region80: #{tpu_custom_call.1} parent=71 // pred_fallthru
          _
      $region72: #{tpu_custom_call.1} parent=5 // pred_fallthru
        _
      %p539 = scmp.le.s32.totalorder 1, %s29
      %p540 = scmp.lt.s32.totalorder %s29, 3
      %p541 = pnand %p539, %p540
      %p542 = pneg %p541
      // Predicated region
      $region81: #{tpu_custom_call.1} parent=5 // pred_check
        _
      $region82: #{tpu_custom_call.1} parent=5 // pred_check_branch
        %544 = sbr.rel (%p541) target = $region84
      $region83: #{tpu_custom_call.1} parent=5 // pred_region
        %s545 = ssub.s32 %s29, 1
        // Predicated region
        $region85: #{tpu_custom_call.1} parent=83 // pred_check
          %p546 = pneg %p114
        $region86: #{tpu_custom_call.1} parent=83 // pred_check_branch
          %548 = sbr.rel (%p546) target = $region88
        $region87: #{tpu_custom_call.1} parent=83 // pred_region
          %549 = dma.done [#allocation5], 16
        $region88: #{tpu_custom_call.1} parent=83 // pred_fallthru
          _
        // Predicated region
        $region89: #{tpu_custom_call.1} parent=83 // pred_check
          %p550 = pneg %p135
        $region90: #{tpu_custom_call.1} parent=83 // pred_check_branch
          %552 = sbr.rel (%p550) target = $region92
        $region91: #{tpu_custom_call.1} parent=83 // pred_region
          %553 = dma.done [#allocation8], 16
        $region92: #{tpu_custom_call.1} parent=83 // pred_fallthru
          _
        // Predicated region
        $region93: #{tpu_custom_call.1} parent=83 // pred_check
          %p554 = pneg %p177
        $region94: #{tpu_custom_call.1} parent=83 // pred_check_branch
          %556 = sbr.rel (%p554) target = $region96
        $region95: #{tpu_custom_call.1} parent=83 // pred_region
          %557 = dma.done [#allocation8], 16
        $region96: #{tpu_custom_call.1} parent=83 // pred_fallthru
          _
        // Predicated region
        $region97: #{tpu_custom_call.1} parent=83 // pred_check
          %p558 = pneg %p219
        $region98: #{tpu_custom_call.1} parent=83 // pred_check_branch
          %560 = sbr.rel (%p558) target = $region100
        $region99: #{tpu_custom_call.1} parent=83 // pred_region
          %561 = dma.done [#allocation11], 16
        $region100: #{tpu_custom_call.1} parent=83 // pred_fallthru
          _
        // Predicated region
        $region101: #{tpu_custom_call.1} parent=83 // pred_check
          %p562 = pneg %p240
        $region102: #{tpu_custom_call.1} parent=83 // pred_check_branch
          %564 = sbr.rel (%p562) target = $region104
        $region103: #{tpu_custom_call.1} parent=83 // pred_region
          %565 = dma.done [#allocation11], 256
        $region104: #{tpu_custom_call.1} parent=83 // pred_fallthru
          _
        // Predicated region
        $region105: #{tpu_custom_call.1} parent=83 // pred_check
          %p566 = pneg %p261
        $region106: #{tpu_custom_call.1} parent=83 // pred_check_branch
          %568 = sbr.rel (%p566) target = $region108
        $region107: #{tpu_custom_call.1} parent=83 // pred_region
          %569 = dma.done [#allocation14], 16
        $region108: #{tpu_custom_call.1} parent=83 // pred_fallthru
          _
        %p570 = scmp.lt.s32.totalorder %s38, 1
        %s571 = scalar_select %p570, %s38, 1
        %s572 = smul.addr %s571, 8
        %s573 = scalar_lea.vmem %s0, %s572
        %p574 = pneg %p67
        %p575 = pneg %p64
        %p576 = scmp.lt.s32.totalorder %s38, 1
        %s577 = scalar_select %p576, %s38, 1
        %s578 = scalar_lea.vmem %s1, %s577
        %p579 = pneg %p93
        %p580 = pneg %p90
        %p581 = pneg %p114
        %p582 = pneg %p111
        %p583 = pneg %p135
        %p584 = pneg %p132
        %p585 = pneg %p156
        %p586 = pneg %p153
        %p587 = pneg %p177
        %p588 = pneg %p174
        %p589 = pneg %p198
        %p590 = pneg %p195
        %p591 = pneg %p219
        %p592 = pneg %p216
        %p593 = pneg %p240
        %p594 = pneg %p237
        %p595 = pneg %p261
        %p596 = pneg %p258
        %p597 = pneg %p282
        %p598 = pneg %p279
        %p599 = pneg %p303
        %p600 = pneg %p300
        %p601 = pneg %p324
        %p602 = pneg %p321
        %p603 = pneg %p345
        %p604 = pneg %p342
        %p605 = pneg %p366
        %p606 = pneg %p363
        %p607 = pneg %p387
        %p608 = pneg %p384
        %p609 = pneg %p415
        %p610 = pneg %p412
        %s611 = sand.u32 %s402, 1
        %s612 = scalar_lea.sflag [#allocation6], %s611
        %s613 = sand.u32 %s402, 1
        %s614 = smul.addr %s613, 8
        %s615 = scalar_lea.vmem [#allocation15], %s614
        %p616 = scmp.lt.s32.totalorder %s38, 1
        %s617 = scalar_select %p616, %s38, 1
        %s618 = smul.addr %s617, 8
        %s619 = scalar_lea.vmem %s0, %s618
        %p620 = scmp.lt.s32.totalorder %s38, 1
        %s621 = scalar_select %p620, %s38, 1
        %s622 = scalar_lea.vmem %s1, %s621
        %p624 = scmp.eq.s32.totalorder %s39, 0
        // Predicated region
        $region109: #{tpu_custom_call.1} parent=83 // pred_check
          %p625 = pneg %p624
        $region110: #{tpu_custom_call.1} parent=83 // pred_check_branch
          %627 = sbr.rel (%p625) target = $region112
        $region111: #{tpu_custom_call.1} parent=83 // pred_region
          %v628 = vld [vmem:[%s619] sm:$0xff]
          %v629 = vld [vmem:[#allocation4] sm:$0x1]
          %v630 = vld [vmem:[#allocation7] sm:$0x1]
          %vm631 = vcmask 261120
          %v632 = vsel %vm631, %v628, 0.0
          %633 = vadd.xlane.f32.xlu0 %v632
          %v634 = vpop.xlane.xlu0 %633
          %v635 = vrcp.pop 32.0
          %v636 = vmul.f32 %v634, %v635
          %v637 = vsub.f32 %v628, %v636
          %v638 = vmul.f32 %v637, %v637
          %v639 = vsel %vm631, %v638, 0.0
          %640 = vadd.xlane.f32.xlu0 %v639
          %v641 = vpop.xlane.xlu0 %640
          %v642 = vmul.f32 %v641, %v635
          %v643 = vadd.f32 %v642, 1e-05
          %v644 = vrsqrt.pop %v643
          %v645 = vmul.f32 %v637, %v644
          %v647 = vlaneseq
          %v648 = vshrl.u32 %v647, 7
          %v649 = vsub.s32 0, %v648
          %v650 = vrot.slane %v629, %v649
          %v652 = vmul.f32 %v645, %v650
          %v654 = vlaneseq
          %v655 = vshrl.u32 %v654, 7
          %v656 = vsub.s32 0, %v655
          %v657 = vrot.slane %v630, %v656
          %v659 = vadd.f32 %v652, %v657
          %v660 = vpack.c.bf16 %v659, %v659
          %vm661 = vcmask 257024
          %662 = vst.msk [vmem:[#allocation2] sm:$0xf] %vm661, %v660
          %v663 = vld [vmem:[%s6] sm:$0xf]
          %v664 = vld [vmem:[%s6 + $0x4] sm:$0xf]
          %v665 = vld [vmem:[%s6 + $0x8] sm:$0xf]
          %v666 = vld [vmem:[%s6 + $0xc] sm:$0xf]
          %v667 = vld [vmem:[#allocation10] sm:$0x1]
          %v669 = vlaneseq
          %v670 = vshrl.u32 %v669, 7
          %v671 = vsub.s32 0, %v670
          %v672 = vrot.slane %v667, %v671
          %v678 = vunpack.c.l.b16 %v663
          %v679 = vunpack.c.l.b16 %v664
          %v680 = vunpack.c.l.b16 %v665
          %v681 = vunpack.c.l.b16 %v666
          %v682 = vpack.c.b16 %v679, %v678
          %v683 = vpack.c.b16 %v681, %v680
          %v687 = vsel %vm631, %v660, 0
          %689 = vmatprep.subr.bf16.mxu0 0
          %690 = vmatpush1.bf16.msra.mxu0 %v682
          %691 = vmatprep.subr.bf16.mxu0 0
          %692 = vmatpush1.bf16.msra.mxu0 %v683
          %693 = vmatprep.subr.bf16.mxu0 0
          %694 = vmatpush1.bf16.msra.mxu0 0
          %695 = vmatprep.subr.bf16.mxu0 0
          %696 = vmatpush1.bf16.msra.mxu0 0
          %697 = vmatprep.subr.bf16.mxu0 0
          %698 = vmatpush1.bf16.msra.mxu0 0
          %699 = vmatprep.subr.bf16.mxu0 0
          %700 = vmatpush1.bf16.msra.mxu0 0
          %701 = vmatprep.subr.bf16.mxu0 0
          %702 = vmatpush1.bf16.msra.mxu0 0
          %703 = vmatprep.subr.bf16.mxu0 0
          %704 = vmatpush1.bf16.msra.mxu0 0
          %705 = vmatprep.subr.bf16.mxu0 0
          %706 = vmatpush1.bf16.msra.mxu0 0
          %707 = vmatprep.subr.bf16.mxu0 0
          %708 = vmatpush1.bf16.msra.mxu0 0
          %709 = vmatprep.subr.bf16.mxu0 0
          %710 = vmatpush1.bf16.msra.mxu0 0
          %711 = vmatprep.subr.bf16.mxu0 0
          %712 = vmatpush1.bf16.msra.mxu0 0
          %713 = vmatprep.subr.bf16.mxu0 0
          %714 = vmatpush1.bf16.msra.mxu0 0
          %715 = vmatprep.subr.bf16.mxu0 0
          %716 = vmatpush1.bf16.msra.mxu0 0
          %717 = vmatprep.subr.bf16.mxu0 0
          %718 = vmatpush1.bf16.msra.mxu0 0
          %719 = vmatprep.subr.bf16.mxu0 0
          %720 = vmatpush1.bf16.msra.mxu0 0
          %721 = vmatprep.mubr.bf16.mxu0 0
          %722 = vmatmul.mubr.bf16.gmra.mrb[0].mxu0 %v687
          %v723 = vpop.f32.mrb[0].mxu0
          %v724 = vadd.f32 %v672, %v723
          %v725 = vpop.f32.mrb[0].mxu0
          %v726 = vpop.f32.mrb[0].mxu0
          %v727 = vpop.f32.mrb[0].mxu0
          %728 = vdwg.mxu0
          %v729 = vpack.c.bf16 %v724, %v724
          %vm730 = vcmask 519168
          %731 = vst.msk [vmem:[#allocation3] sm:$0xf] %vm730, %v729
        $region112: #{tpu_custom_call.1} parent=83 // pred_fallthru
          _
        %s732 = smul.u32 %s39, 8
        %s733 = scalar_lea.vmem %s619, %s732
        %v734 = vld [vmem:[%s733] sm:$0xff]
        %s735 = sshra.s32 %s732, 3
        %s736 = sand.u32 %s732, 7
        %s737 = smul.addr %s735, 4
        %s738 = scalar_lea.vmem [#allocation2], %s737
        %v739 = vld [vmem:[%s738] sm:$0xf]
        %v740 = vld [vmem:[%s622] sm:$0x1]
        %vm741 = vcmp.gt.f32.partialorder %v740, 0.0
        %v742 = vsel %vm741, 0.0, -1e+09
        %v743 = vld [vmem:[%s4] sm:$0xf]
        %v744 = vld [vmem:[%s4 + $0x4] sm:$0xf]
        %v745 = vld [vmem:[%s4 + $0x8] sm:$0xf]
        %v746 = vld [vmem:[%s4 + $0xc] sm:$0xf]
        %v747 = vld [vmem:[#allocation9] sm:$0x1]
        %v749 = vlaneseq
        %v750 = vshrl.u32 %v749, 7
        %v751 = vsub.s32 0, %v750
        %v752 = vrot.slane %v747, %v751
        %v758 = vunpack.c.l.b16 %v743
        %v759 = vunpack.c.l.b16 %v744
        %v760 = vunpack.c.l.b16 %v745
        %v761 = vunpack.c.l.b16 %v746
        %v762 = vpack.c.b16 %v759, %v758
        %v763 = vpack.c.b16 %v761, %v760
        %vm766 = vcmask 261120
        %v768 = vsel %vm766, %v739, 0
        %770 = vmatprep.subr.bf16.mxu0 0
        %771 = vmatpush1.bf16.msra.mxu0 %v762
        %772 = vmatprep.subr.bf16.mxu0 0
        %773 = vmatpush1.bf16.msra.mxu0 %v763
        %774 = vmatprep.subr.bf16.mxu0 0
        %775 = vmatpush1.bf16.msra.mxu0 0
        %776 = vmatprep.subr.bf16.mxu0 0
        %777 = vmatpush1.bf16.msra.mxu0 0
        %778 = vmatprep.subr.bf16.mxu0 0
        %779 = vmatpush1.bf16.msra.mxu0 0
        %780 = vmatprep.subr.bf16.mxu0 0
        %781 = vmatpush1.bf16.msra.mxu0 0
        %782 = vmatprep.subr.bf16.mxu0 0
        %783 = vmatpush1.bf16.msra.mxu0 0
        %784 = vmatprep.subr.bf16.mxu0 0
        %785 = vmatpush1.bf16.msra.mxu0 0
        %786 = vmatprep.subr.bf16.mxu0 0
        %787 = vmatpush1.bf16.msra.mxu0 0
        %788 = vmatprep.subr.bf16.mxu0 0
        %789 = vmatpush1.bf16.msra.mxu0 0
        %790 = vmatprep.subr.bf16.mxu0 0
        %791 = vmatpush1.bf16.msra.mxu0 0
        %792 = vmatprep.subr.bf16.mxu0 0
        %793 = vmatpush1.bf16.msra.mxu0 0
        %794 = vmatprep.subr.bf16.mxu0 0
        %795 = vmatpush1.bf16.msra.mxu0 0
        %796 = vmatprep.subr.bf16.mxu0 0
        %797 = vmatpush1.bf16.msra.mxu0 0
        %798 = vmatprep.subr.bf16.mxu0 0
        %799 = vmatpush1.bf16.msra.mxu0 0
        %800 = vmatprep.subr.bf16.mxu0 0
        %801 = vmatpush1.bf16.msra.mxu0 0
        %802 = vmatprep.mubr.bf16.mxu0 0
        %803 = vmatmul.mubr.bf16.gmra.mrb[0].mxu0 %v768
        %v804 = vpop.f32.mrb[0].mxu0
        %v805 = vadd.f32 %v752, %v804
        %v806 = vpop.f32.mrb[0].mxu0
        %v807 = vpop.f32.mrb[0].mxu0
        %v808 = vpop.f32.mrb[0].mxu0
        %809 = vdwg.mxu0
        %v810 = vmul.f32 %v805, 0.35355338
        %v811 = vpack.c.bf16 %v810, %v810
        %v812 = vld [vmem:[#allocation3] sm:$0xf]
        %v814 = vlaneseq
        %v815 = vshrl.u32 %v814, 7
        %v816 = vsub.s32 0, %v815
        %v817 = vrot.slane %v742, %v816
        %vm819 = vcmask 64512
        %v821 = vsel %vm819, %v811, 0
        %v824 = vsel %vm819, %v812, 0
        %826 = vmatprep.subr.bf16.mxu0 0
        %827 = vmatpush1.bf16.xpose.msra.mxu0 %v824
        %828 = vmatprep.subr.bf16.mxu0 0
        %829 = vmatpush1.bf16.xpose.msra.mxu0 0
        %830 = vmatprep.subr.bf16.mxu0 0
        %831 = vmatpush1.bf16.xpose.msra.mxu0 0
        %832 = vmatprep.subr.bf16.mxu0 0
        %833 = vmatpush1.bf16.xpose.msra.mxu0 0
        %834 = vmatprep.subr.bf16.mxu0 0
        %835 = vmatpush1.bf16.xpose.msra.mxu0 0
        %836 = vmatprep.subr.bf16.mxu0 0
        %837 = vmatpush1.bf16.xpose.msra.mxu0 0
        %838 = vmatprep.subr.bf16.mxu0 0
        %839 = vmatpush1.bf16.xpose.msra.mxu0 0
        %840 = vmatprep.subr.bf16.mxu0 0
        %841 = vmatpush1.bf16.xpose.msra.mxu0 0
        %842 = vmatprep.subr.bf16.mxu0 0
        %843 = vmatpush1.bf16.xpose.msra.mxu0 0
        %844 = vmatprep.subr.bf16.mxu0 0
        %845 = vmatpush1.bf16.xpose.msra.mxu0 0
        %846 = vmatprep.subr.bf16.mxu0 0
        %847 = vmatpush1.bf16.xpose.msra.mxu0 0
        %848 = vmatprep.subr.bf16.mxu0 0
        %849 = vmatpush1.bf16.xpose.msra.mxu0 0
        %850 = vmatprep.subr.bf16.mxu0 0
        %851 = vmatpush1.bf16.xpose.msra.mxu0 0
        %852 = vmatprep.subr.bf16.mxu0 0
        %853 = vmatpush1.bf16.xpose.msra.mxu0 0
        %854 = vmatprep.subr.bf16.mxu0 0
        %855 = vmatpush1.bf16.xpose.msra.mxu0 0
        %856 = vmatprep.subr.bf16.mxu0 0
        %857 = vmatpush1.bf16.xpose.msra.mxu0 0
        %858 = vmatprep.mubr.bf16.mxu0 0
        %859 = vmatmul.mubr.bf16.gmra.mrb[0].mxu0 %v821
        %v860 = vpop.f32.mrb[0].mxu0
        %v861 = vadd.f32 %v817, %v860
        %v862 = vpop.f32.mrb[0].mxu0
        %v863 = vpop.f32.mrb[0].mxu0
        %v864 = vpop.f32.mrb[0].mxu0
        %865 = vdwg.mxu0
        %v866 = vsel %vm819, %v861, -inf
        %867 = vmax.xlane.f32.xlu0 %v866
        %v868 = vpop.xlane.xlu0 %867
        %v869 = vsub.f32 %v861, %v868
        %v870 = vmul.f32 %v869, 1.442695
        %v871 = vpow.pop %v870
        %v872 = vsel %vm819, %v871, 0.0
        %873 = vadd.xlane.f32.xlu0 %v872
        %v874 = vpop.xlane.xlu0 %873
        %v875 = vrcp.pop %v874
        %v876 = vmul.f32 %v871, %v875
        %v877 = vpack.c.bf16 %v876, %v876
        %v879 = vunpack.c.l.b16 %v812
        %v880 = vpack.c.b16 %v879, %v879
        %881 = vrot.lane.b32.xlu0 %v880, 96
        %v882 = vpop.permute.xlu0 %881
        %v884 = vsel %vm819, %v877, 0
        %vm886 = vcmask 1043456
        %v888 = vsel %vm886, %v882, 0
        %890 = vmatprep.subr.bf16.mxu0 0
        %891 = vmatpush1.bf16.msra.mxu0 %v888
        %892 = vmatprep.subr.bf16.mxu0 0
        %893 = vmatpush1.bf16.msra.mxu0 0
        %894 = vmatprep.subr.bf16.mxu0 0
        %895 = vmatpush1.bf16.msra.mxu0 0
        %896 = vmatprep.subr.bf16.mxu0 0
        %897 = vmatpush1.bf16.msra.mxu0 0
        %898 = vmatprep.subr.bf16.mxu0 0
        %899 = vmatpush1.bf16.msra.mxu0 0
        %900 = vmatprep.subr.bf16.mxu0 0
        %901 = vmatpush1.bf16.msra.mxu0 0
        %902 = vmatprep.subr.bf16.mxu0 0
        %903 = vmatpush1.bf16.msra.mxu0 0
        %904 = vmatprep.subr.bf16.mxu0 0
        %905 = vmatpush1.bf16.msra.mxu0 0
        %906 = vmatprep.subr.bf16.mxu0 0
        %907 = vmatpush1.bf16.msra.mxu0 0
        %908 = vmatprep.subr.bf16.mxu0 0
        %909 = vmatpush1.bf16.msra.mxu0 0
        %910 = vmatprep.subr.bf16.mxu0 0
        %911 = vmatpush1.bf16.msra.mxu0 0
        %912 = vmatprep.subr.bf16.mxu0 0
        %913 = vmatpush1.bf16.msra.mxu0 0
        %914 = vmatprep.subr.bf16.mxu0 0
        %915 = vmatpush1.bf16.msra.mxu0 0
        %916 = vmatprep.subr.bf16.mxu0 0
        %917 = vmatpush1.bf16.msra.mxu0 0
        %918 = vmatprep.subr.bf16.mxu0 0
        %919 = vmatpush1.bf16.msra.mxu0 0
        %920 = vmatprep.subr.bf16.mxu0 0
        %921 = vmatpush1.bf16.msra.mxu0 0
        %922 = vmatprep.mubr.bf16.mxu0 0
        %923 = vmatmul.mubr.bf16.gmra.mrb[0].mxu0 %v884
        %v924 = vpop.f32.mrb[0].mxu0
        %v925 = vadd.f32 0.0, %v924
        %v926 = vpop.f32.mrb[0].mxu0
        %v927 = vpop.f32.mrb[0].mxu0
        %v928 = vpop.f32.mrb[0].mxu0
        %929 = vdwg.mxu0
        %v930 = vpack.c.bf16 %v925, %v925
        %932 = vrot.lane.b32.xlu0 %v811, 120
        %v933 = vpop.permute.xlu0 %932
        %934 = vrot.lane.b32.xlu0 %v880, 120
        %v935 = vpop.permute.xlu0 %934
        %v937 = vsel %vm819, %v933, 0
        %v940 = vsel %vm819, %v935, 0
        %942 = vmatprep.subr.bf16.mxu0 0
        %943 = vmatpush1.bf16.xpose.msra.mxu0 %v940
        %944 = vmatprep.subr.bf16.mxu0 0
        %945 = vmatpush1.bf16.xpose.msra.mxu0 0
        %946 = vmatprep.subr.bf16.mxu0 0
        %947 = vmatpush1.bf16.xpose.msra.mxu0 0
        %948 = vmatprep.subr.bf16.mxu0 0
        %949 = vmatpush1.bf16.xpose.msra.mxu0 0
        %950 = vmatprep.subr.bf16.mxu0 0
        %951 = vmatpush1.bf16.xpose.msra.mxu0 0
        %952 = vmatprep.subr.bf16.mxu0 0
        %953 = vmatpush1.bf16.xpose.msra.mxu0 0
        %954 = vmatprep.subr.bf16.mxu0 0
        %955 = vmatpush1.bf16.xpose.msra.mxu0 0
        %956 = vmatprep.subr.bf16.mxu0 0
        %957 = vmatpush1.bf16.xpose.msra.mxu0 0
        %958 = vmatprep.subr.bf16.mxu0 0
        %959 = vmatpush1.bf16.xpose.msra.mxu0 0
        %960 = vmatprep.subr.bf16.mxu0 0
        %961 = vmatpush1.bf16.xpose.msra.mxu0 0
        %962 = vmatprep.subr.bf16.mxu0 0
        %963 = vmatpush1.bf16.xpose.msra.mxu0 0
        %964 = vmatprep.subr.bf16.mxu0 0
        %965 = vmatpush1.bf16.xpose.msra.mxu0 0
        %966 = vmatprep.subr.bf16.mxu0 0
        %967 = vmatpush1.bf16.xpose.msra.mxu0 0
        %968 = vmatprep.subr.bf16.mxu0 0
        %969 = vmatpush1.bf16.xpose.msra.mxu0 0
        %970 = vmatprep.subr.bf16.mxu0 0
        %971 = vmatpush1.bf16.xpose.msra.mxu0 0
        %972 = vmatprep.subr.bf16.mxu0 0
        %973 = vmatpush1.bf16.xpose.msra.mxu0 0
        %974 = vmatprep.mubr.bf16.mxu0 0
        %975 = vmatmul.mubr.bf16.gmra.mrb[0].mxu0 %v937
        %v976 = vpop.f32.mrb[0].mxu0
        %v977 = vadd.f32 %v817, %v976
        %v978 = vpop.f32.mrb[0].mxu0
        %v979 = vpop.f32.mrb[0].mxu0
        %v980 = vpop.f32.mrb[0].mxu0
        %981 = vdwg.mxu0
        %v982 = vsel %vm819, %v977, -inf
        %983 = vmax.xlane.f32.xlu0 %v982
        %v984 = vpop.xlane.xlu0 %983
        %v985 = vsub.f32 %v977, %v984
        %v986 = vmul.f32 %v985, 1.442695
        %v987 = vpow.pop %v986
        %v988 = vsel %vm819, %v987, 0.0
        %989 = vadd.xlane.f32.xlu0 %v988
        %v990 = vpop.xlane.xlu0 %989
        %v991 = vrcp.pop %v990
        %v992 = vmul.f32 %v987, %v991
        %v993 = vpack.c.bf16 %v992, %v992
        %994 = vrot.lane.b32.xlu0 %v880, 88
        %v995 = vpop.permute.xlu0 %994
        %v997 = vsel %vm819, %v993, 0
        %v1000 = vsel %vm886, %v995, 0
        %1002 = vmatprep.subr.bf16.mxu0 0
        %1003 = vmatpush1.bf16.msra.mxu0 %v1000
        %1004 = vmatprep.subr.bf16.mxu0 0
        %1005 = vmatpush1.bf16.msra.mxu0 0
        %1006 = vmatprep.subr.bf16.mxu0 0
        %1007 = vmatpush1.bf16.msra.mxu0 0
        %1008 = vmatprep.subr.bf16.mxu0 0
        %1009 = vmatpush1.bf16.msra.mxu0 0
        %1010 = vmatprep.subr.bf16.mxu0 0
        %1011 = vmatpush1.bf16.msra.mxu0 0
        %1012 = vmatprep.subr.bf16.mxu0 0
        %1013 = vmatpush1.bf16.msra.mxu0 0
        %1014 = vmatprep.subr.bf16.mxu0 0
        %1015 = vmatpush1.bf16.msra.mxu0 0
        %1016 = vmatprep.subr.bf16.mxu0 0
        %1017 = vmatpush1.bf16.msra.mxu0 0
        %1018 = vmatprep.subr.bf16.mxu0 0
        %1019 = vmatpush1.bf16.msra.mxu0 0
        %1020 = vmatprep.subr.bf16.mxu0 0
        %1021 = vmatpush1.bf16.msra.mxu0 0
        %1022 = vmatprep.subr.bf16.mxu0 0
        %1023 = vmatpush1.bf16.msra.mxu0 0
        %1024 = vmatprep.subr.bf16.mxu0 0
        %1025 = vmatpush1.bf16.msra.mxu0 0
        %1026 = vmatprep.subr.bf16.mxu0 0
        %1027 = vmatpush1.bf16.msra.mxu0 0
        %1028 = vmatprep.subr.bf16.mxu0 0
        %1029 = vmatpush1.bf16.msra.mxu0 0
        %1030 = vmatprep.subr.bf16.mxu0 0
        %1031 = vmatpush1.bf16.msra.mxu0 0
        %1032 = vmatprep.subr.bf16.mxu0 0
        %1033 = vmatpush1.bf16.msra.mxu0 0
        %1034 = vmatprep.mubr.bf16.mxu0 0
        %1035 = vmatmul.mubr.bf16.gmra.mrb[0].mxu0 %v997
        %v1036 = vpop.f32.mrb[0].mxu0
        %v1037 = vadd.f32 0.0, %v1036
        %v1038 = vpop.f32.mrb[0].mxu0
        %v1039 = vpop.f32.mrb[0].mxu0
        %v1040 = vpop.f32.mrb[0].mxu0
        %1041 = vdwg.mxu0
        %v1042 = vpack.c.bf16 %v1037, %v1037
        %1043 = vrot.lane.b32.xlu0 %v811, 112
        %v1044 = vpop.permute.xlu0 %1043
        %1045 = vrot.lane.b32.xlu0 %v880, 112
        %v1046 = vpop.permute.xlu0 %1045
        %v1048 = vsel %vm819, %v1044, 0
        %v1051 = vsel %vm819, %v1046, 0
        %1053 = vmatprep.subr.bf16.mxu0 0
        %1054 = vmatpush1.bf16.xpose.msra.mxu0 %v1051
        %1055 = vmatprep.subr.bf16.mxu0 0
        %1056 = vmatpush1.bf16.xpose.msra.mxu0 0
        %1057 = vmatprep.subr.bf16.mxu0 0
        %1058 = vmatpush1.bf16.xpose.msra.mxu0 0
        %1059 = vmatprep.subr.bf16.mxu0 0
        %1060 = vmatpush1.bf16.xpose.msra.mxu0 0
        %1061 = vmatprep.subr.bf16.mxu0 0
        %1062 = vmatpush1.bf16.xpose.msra.mxu0 0
        %1063 = vmatprep.subr.bf16.mxu0 0
        %1064 = vmatpush1.bf16.xpose.msra.mxu0 0
        %1065 = vmatprep.subr.bf16.mxu0 0
        %1066 = vmatpush1.bf16.xpose.msra.mxu0 0
        %1067 = vmatprep.subr.bf16.mxu0 0
        %1068 = vmatpush1.bf16.xpose.msra.mxu0 0
        %1069 = vmatprep.subr.bf16.mxu0 0
        %1070 = vmatpush1.bf16.xpose.msra.mxu0 0
        %1071 = vmatprep.subr.bf16.mxu0 0
        %1072 = vmatpush1.bf16.xpose.msra.mxu0 0
        %1073 = vmatprep.subr.bf16.mxu0 0
        %1074 = vmatpush1.bf16.xpose.msra.mxu0 0
        %1075 = vmatprep.subr.bf16.mxu0 0
        %1076 = vmatpush1.bf16.xpose.msra.mxu0 0
        %1077 = vmatprep.subr.bf16.mxu0 0
        %1078 = vmatpush1.bf16.xpose.msra.mxu0 0
        %1079 = vmatprep.subr.bf16.mxu0 0
        %1080 = vmatpush1.bf16.xpose.msra.mxu0 0
        %1081 = vmatprep.subr.bf16.mxu0 0
        %1082 = vmatpush1.bf16.xpose.msra.mxu0 0
        %1083 = vmatprep.subr.bf16.mxu0 0
        %1084 = vmatpush1.bf16.xpose.msra.mxu0 0
        %1085 = vmatprep.mubr.bf16.mxu0 0
        %1086 = vmatmul.mubr.bf16.gmra.mrb[0].mxu0 %v1048
        %v1087 = vpop.f32.mrb[0].mxu0
        %v1088 = vadd.f32 %v817, %v1087
        %v1089 = vpop.f32.mrb[0].mxu0
        %v1090 = vpop.f32.mrb[0].mxu0
        %v1091 = vpop.f32.mrb[0].mxu0
        %1092 = vdwg.mxu0
        %v1093 = vsel %vm819, %v1088, -inf
        %1094 = vmax.xlane.f32.xlu0 %v1093
        %v1095 = vpop.xlane.xlu0 %1094
        %v1096 = vsub.f32 %v1088, %v1095
        %v1097 = vmul.f32 %v1096, 1.442695
        %v1098 = vpow.pop %v1097
        %v1099 = vsel %vm819, %v1098, 0.0
        %1100 = vadd.xlane.f32.xlu0 %v1099
        %v1101 = vpop.xlane.xlu0 %1100
        %v1102 = vrcp.pop %v1101
        %v1103 = vmul.f32 %v1098, %v1102
        %v1104 = vpack.c.bf16 %v1103, %v1103
        %1105 = vrot.lane.b32.xlu0 %v880, 80
        %v1106 = vpop.permute.xlu0 %1105
        %v1108 = vsel %vm819, %v1104, 0
        %v1111 = vsel %vm886, %v1106, 0
        %1113 = vmatprep.subr.bf16.mxu0 0
        %1114 = vmatpush1.bf16.msra.mxu0 %v1111
        %1115 = vmatprep.subr.bf16.mxu0 0
        %1116 = vmatpush1.bf16.msra.mxu0 0
        %1117 = vmatprep.subr.bf16.mxu0 0
        %1118 = vmatpush1.bf16.msra.mxu0 0
        %1119 = vmatprep.subr.bf16.mxu0 0
        %1120 = vmatpush1.bf16.msra.mxu0 0
        %1121 = vmatprep.subr.bf16.mxu0 0
        %1122 = vmatpush1.bf16.msra.mxu0 0
        %1123 = vmatprep.subr.bf16.mxu0 0
        %1124 = vmatpush1.bf16.msra.mxu0 0
        %1125 = vmatprep.subr.bf16.mxu0 0
        %1126 = vmatpush1.bf16.msra.mxu0 0
        %1127 = vmatprep.subr.bf16.mxu0 0
        %1128 = vmatpush1.bf16.msra.mxu0 0
        %1129 = vmatprep.subr.bf16.mxu0 0
        %1130 = vmatpush1.bf16.msra.mxu0 0
        %1131 = vmatprep.subr.bf16.mxu0 0
        %1132 = vmatpush1.bf16.msra.mxu0 0
        %1133 = vmatprep.subr.bf16.mxu0 0
        %1134 = vmatpush1.bf16.msra.mxu0 0
        %1135 = vmatprep.subr.bf16.mxu0 0
        %1136 = vmatpush1.bf16.msra.mxu0 0
        %1137 = vmatprep.subr.bf16.mxu0 0
        %1138 = vmatpush1.bf16.msra.mxu0 0
        %1139 = vmatprep.subr.bf16.mxu0 0
        %1140 = vmatpush1.bf16.msra.mxu0 0
        %1141 = vmatprep.subr.bf16.mxu0 0
        %1142 = vmatpush1.bf16.msra.mxu0 0
        %1143 = vmatprep.subr.bf16.mxu0 0
        %1144 = vmatpush1.bf16.msra.mxu0 0
        %1145 = vmatprep.mubr.bf16.mxu0 0
        %1146 = vmatmul.mubr.bf16.gmra.mrb[0].mxu0 %v1108
        %v1147 = vpop.f32.mrb[0].mxu0
        %v1148 = vadd.f32 0.0, %v1147
        %v1149 = vpop.f32.mrb[0].mxu0
        %v1150 = vpop.f32.mrb[0].mxu0
        %v1151 = vpop.f32.mrb[0].mxu0
        %1152 = vdwg.mxu0
        %v1153 = vpack.c.bf16 %v1148, %v1148
        %1154 = vrot.lane.b32.xlu0 %v811, 104
        %v1155 = vpop.permute.xlu0 %1154
        %1156 = vrot.lane.b32.xlu0 %v880, 104
        %v1157 = vpop.permute.xlu0 %1156
        %v1159 = vsel %vm819, %v1155, 0
        %v1162 = vsel %vm819, %v1157, 0
        %1164 = vmatprep.subr.bf16.mxu0 0
        %1165 = vmatpush1.bf16.xpose.msra.mxu0 %v1162
        %1166 = vmatprep.subr.bf16.mxu0 0
        %1167 = vmatpush1.bf16.xpose.msra.mxu0 0
        %1168 = vmatprep.subr.bf16.mxu0 0
        %1169 = vmatpush1.bf16.xpose.msra.mxu0 0
        %1170 = vmatprep.subr.bf16.mxu0 0
        %1171 = vmatpush1.bf16.xpose.msra.mxu0 0
        %1172 = vmatprep.subr.bf16.mxu0 0
        %1173 = vmatpush1.bf16.xpose.msra.mxu0 0
        %1174 = vmatprep.subr.bf16.mxu0 0
        %1175 = vmatpush1.bf16.xpose.msra.mxu0 0
        %1176 = vmatprep.subr.bf16.mxu0 0
        %1177 = vmatpush1.bf16.xpose.msra.mxu0 0
        %1178 = vmatprep.subr.bf16.mxu0 0
        %1179 = vmatpush1.bf16.xpose.msra.mxu0 0
        %1180 = vmatprep.subr.bf16.mxu0 0
        %1181 = vmatpush1.bf16.xpose.msra.mxu0 0
        %1182 = vmatprep.subr.bf16.mxu0 0
        %1183 = vmatpush1.bf16.xpose.msra.mxu0 0
        %1184 = vmatprep.subr.bf16.mxu0 0
        %1185 = vmatpush1.bf16.xpose.msra.mxu0 0
        %1186 = vmatprep.subr.bf16.mxu0 0
        %1187 = vmatpush1.bf16.xpose.msra.mxu0 0
        %1188 = vmatprep.subr.bf16.mxu0 0
        %1189 = vmatpush1.bf16.xpose.msra.mxu0 0
        %1190 = vmatprep.subr.bf16.mxu0 0
        %1191 = vmatpush1.bf16.xpose.msra.mxu0 0
        %1192 = vmatprep.subr.bf16.mxu0 0
        %1193 = vmatpush1.bf16.xpose.msra.mxu0 0
        %1194 = vmatprep.subr.bf16.mxu0 0
        %1195 = vmatpush1.bf16.xpose.msra.mxu0 0
        %1196 = vmatprep.mubr.bf16.mxu0 0
        %1197 = vmatmul.mubr.bf16.gmra.mrb[0].mxu0 %v1159
        %v1198 = vpop.f32.mrb[0].mxu0
        %v1199 = vadd.f32 %v817, %v1198
        %v1200 = vpop.f32.mrb[0].mxu0
        %v1201 = vpop.f32.mrb[0].mxu0
        %v1202 = vpop.f32.mrb[0].mxu0
        %1203 = vdwg.mxu0
        %v1204 = vsel %vm819, %v1199, -inf
        %1205 = vmax.xlane.f32.xlu0 %v1204
        %v1206 = vpop.xlane.xlu0 %1205
        %v1207 = vsub.f32 %v1199, %v1206
        %v1208 = vmul.f32 %v1207, 1.442695
        %v1209 = vpow.pop %v1208
        %v1210 = vsel %vm819, %v1209, 0.0
        %1211 = vadd.xlane.f32.xlu0 %v1210
        %v1212 = vpop.xlane.xlu0 %1211
        %v1213 = vrcp.pop %v1212
        %v1214 = vmul.f32 %v1209, %v1213
        %v1215 = vpack.c.bf16 %v1214, %v1214
        %1216 = vrot.lane.b32.xlu0 %v880, 72
        %v1217 = vpop.permute.xlu0 %1216
        %v1219 = vsel %vm819, %v1215, 0
        %v1222 = vsel %vm886, %v1217, 0
        %1224 = vmatprep.subr.bf16.mxu0 0
        %1225 = vmatpush1.bf16.msra.mxu0 %v1222
        %1226 = vmatprep.subr.bf16.mxu0 0
        %1227 = vmatpush1.bf16.msra.mxu0 0
        %1228 = vmatprep.subr.bf16.mxu0 0
        %1229 = vmatpush1.bf16.msra.mxu0 0
        %1230 = vmatprep.subr.bf16.mxu0 0
        %1231 = vmatpush1.bf16.msra.mxu0 0
        %1232 = vmatprep.subr.bf16.mxu0 0
        %1233 = vmatpush1.bf16.msra.mxu0 0
        %1234 = vmatprep.subr.bf16.mxu0 0
        %1235 = vmatpush1.bf16.msra.mxu0 0
        %1236 = vmatprep.subr.bf16.mxu0 0
        %1237 = vmatpush1.bf16.msra.mxu0 0
        %1238 = vmatprep.subr.bf16.mxu0 0
        %1239 = vmatpush1.bf16.msra.mxu0 0
        %1240 = vmatprep.subr.bf16.mxu0 0
        %1241 = vmatpush1.bf16.msra.mxu0 0
        %1242 = vmatprep.subr.bf16.mxu0 0
        %1243 = vmatpush1.bf16.msra.mxu0 0
        %1244 = vmatprep.subr.bf16.mxu0 0
        %1245 = vmatpush1.bf16.msra.mxu0 0
        %1246 = vmatprep.subr.bf16.mxu0 0
        %1247 = vmatpush1.bf16.msra.mxu0 0
        %1248 = vmatprep.subr.bf16.mxu0 0
        %1249 = vmatpush1.bf16.msra.mxu0 0
        %1250 = vmatprep.subr.bf16.mxu0 0
        %1251 = vmatpush1.bf16.msra.mxu0 0
        %1252 = vmatprep.subr.bf16.mxu0 0
        %1253 = vmatpush1.bf16.msra.mxu0 0
        %1254 = vmatprep.subr.bf16.mxu0 0
        %1255 = vmatpush1.bf16.msra.mxu0 0
        %1256 = vmatprep.mubr.bf16.mxu0 0
        %1257 = vmatmul.mubr.bf16.gmra.mrb[0].mxu0 %v1219
        %v1258 = vpop.f32.mrb[0].mxu0
        %v1259 = vadd.f32 0.0, %v1258
        %v1260 = vpop.f32.mrb[0].mxu0
        %v1261 = vpop.f32.mrb[0].mxu0
        %v1262 = vpop.f32.mrb[0].mxu0
        %1263 = vdwg.mxu0
        %v1264 = vpack.c.bf16 %v1259, %v1259
        %1266 = vrot.lane.b32.xlu0 %v1042, 8
        %v1267 = vpop.permute.xlu0 %1266
        %1269 = vrot.lane.b32.xlu0 %v1153, 16
        %v1270 = vpop.permute.xlu0 %1269
        %1272 = vrot.lane.b32.xlu0 %v1264, 24
        %v1273 = vpop.permute.xlu0 %1272
        %v1276 = vsel %vm819, %v930, %v1267
        %vm1277 = vcmask 130048
        %v1279 = vsel %vm1277, %v1276, %v1270
        %vm1280 = vcmask 195584
        %v1282 = vsel %vm1280, %v1279, %v1273
        %v1283 = vld [vmem:[#allocation12] sm:$0xf]
        %v1284 = vld [vmem:[#allocation12 + $0x4] sm:$0xf]
        %v1285 = vld [vmem:[#allocation12 + $0x8] sm:$0xf]
        %v1286 = vld [vmem:[#allocation12 + $0xc] sm:$0xf]
        %v1287 = vld [vmem:[#allocation13] sm:$0x1]
        %v1289 = vlaneseq
        %v1290 = vshrl.u32 %v1289, 7
        %v1291 = vsub.s32 0, %v1290
        %v1292 = vrot.slane %v1287, %v1291
        %v1298 = vunpack.c.l.b16 %v1283
        %v1299 = vunpack.c.l.b16 %v1284
        %v1300 = vunpack.c.l.b16 %v1285
        %v1301 = vunpack.c.l.b16 %v1286
        %v1302 = vpack.c.b16 %v1299, %v1298
        %v1303 = vpack.c.b16 %v1301, %v1300
        %v1306 = vsel %vm766, %v1282, 0
        %1308 = vmatprep.subr.bf16.mxu0 0
        %1309 = vmatpush1.bf16.msra.mxu0 %v1302
        %1310 = vmatprep.subr.bf16.mxu0 0
        %1311 = vmatpush1.bf16.msra.mxu0 %v1303
        %1312 = vmatprep.subr.bf16.mxu0 0
        %1313 = vmatpush1.bf16.msra.mxu0 0
        %1314 = vmatprep.subr.bf16.mxu0 0
        %1315 = vmatpush1.bf16.msra.mxu0 0
        %1316 = vmatprep.subr.bf16.mxu0 0
        %1317 = vmatpush1.bf16.msra.mxu0 0
        %1318 = vmatprep.subr.bf16.mxu0 0
        %1319 = vmatpush1.bf16.msra.mxu0 0
        %1320 = vmatprep.subr.bf16.mxu0 0
        %1321 = vmatpush1.bf16.msra.mxu0 0
        %1322 = vmatprep.subr.bf16.mxu0 0
        %1323 = vmatpush1.bf16.msra.mxu0 0
        %1324 = vmatprep.subr.bf16.mxu0 0
        %1325 = vmatpush1.bf16.msra.mxu0 0
        %1326 = vmatprep.subr.bf16.mxu0 0
        %1327 = vmatpush1.bf16.msra.mxu0 0
        %1328 = vmatprep.subr.bf16.mxu0 0
        %1329 = vmatpush1.bf16.msra.mxu0 0
        %1330 = vmatprep.subr.bf16.mxu0 0
        %1331 = vmatpush1.bf16.msra.mxu0 0
        %1332 = vmatprep.subr.bf16.mxu0 0
        %1333 = vmatpush1.bf16.msra.mxu0 0
        %1334 = vmatprep.subr.bf16.mxu0 0
        %1335 = vmatpush1.bf16.msra.mxu0 0
        %1336 = vmatprep.subr.bf16.mxu0 0
        %1337 = vmatpush1.bf16.msra.mxu0 0
        %1338 = vmatprep.subr.bf16.mxu0 0
        %1339 = vmatpush1.bf16.msra.mxu0 0
        %1340 = vmatprep.mubr.bf16.mxu0 0
        %1341 = vmatmul.mubr.bf16.gmra.mrb[0].mxu0 %v1306
        %v1342 = vpop.f32.mrb[0].mxu0
        %v1343 = vadd.f32 %v1292, %v1342
        %v1344 = vpop.f32.mrb[0].mxu0
        %v1345 = vpop.f32.mrb[0].mxu0
        %v1346 = vpop.f32.mrb[0].mxu0
        %1347 = vdwg.mxu0
        %v1348 = vadd.f32 %v734, %v1343
        %v1349 = vld [vmem:[%s10] sm:$0x1]
        %v1350 = vld [vmem:[%s11] sm:$0x1]
        %v1351 = vsel %vm766, %v1348, 0.0
        %1352 = vadd.xlane.f32.xlu0 %v1351
        %v1353 = vpop.xlane.xlu0 %1352
        %v1354 = vrcp.pop 32.0
        %v1355 = vmul.f32 %v1353, %v1354
        %v1356 = vsub.f32 %v1348, %v1355
        %v1357 = vmul.f32 %v1356, %v1356
        %v1358 = vsel %vm766, %v1357, 0.0
        %1359 = vadd.xlane.f32.xlu0 %v1358
        %v1360 = vpop.xlane.xlu0 %1359
        %v1361 = vmul.f32 %v1360, %v1354
        %v1362 = vadd.f32 %v1361, 1e-05
        %v1363 = vrsqrt.pop %v1362
        %v1364 = vmul.f32 %v1356, %v1363
        %v1366 = vlaneseq
        %v1367 = vshrl.u32 %v1366, 7
        %v1368 = vsub.s32 0, %v1367
        %v1369 = vrot.slane %v1349, %v1368
        %v1371 = vmul.f32 %v1364, %v1369
        %v1373 = vlaneseq
        %v1374 = vshrl.u32 %v1373, 7
        %v1375 = vsub.s32 0, %v1374
        %v1376 = vrot.slane %v1350, %v1375
        %v1378 = vadd.f32 %v1371, %v1376
        %v1379 = vpack.c.bf16 %v1378, %v1378
        %v1380 = vld [vmem:[%s12] sm:$0xf]
        %v1381 = vld [vmem:[%s12 + $0x4] sm:$0xf]
        %v1382 = vld [vmem:[%s12 + $0x8] sm:$0xf]
        %v1383 = vld [vmem:[%s12 + $0xc] sm:$0xf]
        %v1384 = vld [vmem:[%s13] sm:$0x1]
        %v1386 = vlaneseq
        %v1387 = vshrl.u32 %v1386, 7
        %v1388 = vsub.s32 0, %v1387
        %v1389 = vrot.slane %v1384, %v1388
        %v1395 = vunpack.c.l.b16 %v1380
        %v1396 = vunpack.c.l.b16 %v1381
        %v1397 = vunpack.c.l.b16 %v1382
        %v1398 = vunpack.c.l.b16 %v1383
        %v1399 = vpack.c.b16 %v1396, %v1395
        %v1400 = vpack.c.b16 %v1398, %v1397
        %v1404 = vsel %vm766, %v1379, 0
        %1406 = vmatprep.subr.bf16.mxu0 0
        %1407 = vmatpush1.bf16.msra.mxu0 %v1399
        %1408 = vmatprep.subr.bf16.mxu0 0
        %1409 = vmatpush1.bf16.msra.mxu0 %v1400
        %1410 = vmatprep.subr.bf16.mxu0 0
        %1411 = vmatpush1.bf16.msra.mxu0 0
        %1412 = vmatprep.subr.bf16.mxu0 0
        %1413 = vmatpush1.bf16.msra.mxu0 0
        %1414 = vmatprep.subr.bf16.mxu0 0
        %1415 = vmatpush1.bf16.msra.mxu0 0
        %1416 = vmatprep.subr.bf16.mxu0 0
        %1417 = vmatpush1.bf16.msra.mxu0 0
        %1418 = vmatprep.subr.bf16.mxu0 0
        %1419 = vmatpush1.bf16.msra.mxu0 0
        %1420 = vmatprep.subr.bf16.mxu0 0
        %1421 = vmatpush1.bf16.msra.mxu0 0
        %1422 = vmatprep.subr.bf16.mxu0 0
        %1423 = vmatpush1.bf16.msra.mxu0 0
        %1424 = vmatprep.subr.bf16.mxu0 0
        %1425 = vmatpush1.bf16.msra.mxu0 0
        %1426 = vmatprep.subr.bf16.mxu0 0
        %1427 = vmatpush1.bf16.msra.mxu0 0
        %1428 = vmatprep.subr.bf16.mxu0 0
        %1429 = vmatpush1.bf16.msra.mxu0 0
        %1430 = vmatprep.subr.bf16.mxu0 0
        %1431 = vmatpush1.bf16.msra.mxu0 0
        %1432 = vmatprep.subr.bf16.mxu0 0
        %1433 = vmatpush1.bf16.msra.mxu0 0
        %1434 = vmatprep.subr.bf16.mxu0 0
        %1435 = vmatpush1.bf16.msra.mxu0 0
        %1436 = vmatprep.subr.bf16.mxu0 0
        %1437 = vmatpush1.bf16.msra.mxu0 0
        %1438 = vmatprep.mubr.bf16.mxu0 0
        %1439 = vmatmul.mubr.bf16.gmra.mrb[0].mxu0 %v1404
        %v1440 = vpop.f32.mrb[0].mxu0
        %v1441 = vadd.f32 %v1389, %v1440
        %v1442 = vpop.f32.mrb[0].mxu0
        %v1443 = vpop.f32.mrb[0].mxu0
        %v1444 = vpop.f32.mrb[0].mxu0
        %1445 = vdwg.mxu0
        %v1446 = vmax.f32 %v1441, 0.0
        %v1447 = vpack.c.bf16 %v1446, %v1446
        %v1448 = vld [vmem:[%s14] sm:$0xf]
        %v1449 = vld [vmem:[%s14 + $0x4] sm:$0xf]
        %v1450 = vld [vmem:[%s14 + $0x8] sm:$0xf]
        %v1451 = vld [vmem:[%s14 + $0xc] sm:$0xf]
        %v1452 = vld [vmem:[%s14 + $0x10] sm:$0xf]
        %v1453 = vld [vmem:[%s14 + $0x14] sm:$0xf]
        %v1454 = vld [vmem:[%s14 + $0x18] sm:$0xf]
        %v1455 = vld [vmem:[%s14 + $0x1c] sm:$0xf]
        %v1456 = vld [vmem:[%s15] sm:$0x1]
        %v1458 = vlaneseq
        %v1459 = vshrl.u32 %v1458, 7
        %v1460 = vsub.s32 0, %v1459
        %v1461 = vrot.slane %v1456, %v1460
        %v1471 = vunpack.c.l.b16 %v1448
        %v1472 = vunpack.c.l.b16 %v1449
        %v1473 = vunpack.c.l.b16 %v1450
        %v1474 = vunpack.c.l.b16 %v1451
        %v1475 = vunpack.c.l.b16 %v1452
        %v1476 = vunpack.c.l.b16 %v1453
        %v1477 = vunpack.c.l.b16 %v1454
        %v1478 = vunpack.c.l.b16 %v1455
        %v1479 = vpack.c.b16 %v1472, %v1471
        %v1480 = vpack.c.b16 %v1474, %v1473
        %v1481 = vpack.c.b16 %v1476, %v1475
        %v1482 = vpack.c.b16 %v1478, %v1477
        %vm1487 = vcmask 523264
        %v1489 = vsel %vm1487, %v1447, 0
        %1491 = vmatprep.subr.bf16.mxu0 0
        %1492 = vmatpush1.bf16.msra.mxu0 %v1479
        %1493 = vmatprep.subr.bf16.mxu0 0
        %1494 = vmatpush1.bf16.msra.mxu0 %v1480
        %1495 = vmatprep.subr.bf16.mxu0 0
        %1496 = vmatpush1.bf16.msra.mxu0 %v1481
        %1497 = vmatprep.subr.bf16.mxu0 0
        %1498 = vmatpush1.bf16.msra.mxu0 %v1482
        %1499 = vmatprep.subr.bf16.mxu0 0
        %1500 = vmatpush1.bf16.msra.mxu0 0
        %1501 = vmatprep.subr.bf16.mxu0 0
        %1502 = vmatpush1.bf16.msra.mxu0 0
        %1503 = vmatprep.subr.bf16.mxu0 0
        %1504 = vmatpush1.bf16.msra.mxu0 0
        %1505 = vmatprep.subr.bf16.mxu0 0
        %1506 = vmatpush1.bf16.msra.mxu0 0
        %1507 = vmatprep.subr.bf16.mxu0 0
        %1508 = vmatpush1.bf16.msra.mxu0 0
        %1509 = vmatprep.subr.bf16.mxu0 0
        %1510 = vmatpush1.bf16.msra.mxu0 0
        %1511 = vmatprep.subr.bf16.mxu0 0
        %1512 = vmatpush1.bf16.msra.mxu0 0
        %1513 = vmatprep.subr.bf16.mxu0 0
        %1514 = vmatpush1.bf16.msra.mxu0 0
        %1515 = vmatprep.subr.bf16.mxu0 0
        %1516 = vmatpush1.bf16.msra.mxu0 0
        %1517 = vmatprep.subr.bf16.mxu0 0
        %1518 = vmatpush1.bf16.msra.mxu0 0
        %1519 = vmatprep.subr.bf16.mxu0 0
        %1520 = vmatpush1.bf16.msra.mxu0 0
        %1521 = vmatprep.subr.bf16.mxu0 0
        %1522 = vmatpush1.bf16.msra.mxu0 0
        %1523 = vmatprep.mubr.bf16.mxu0 0
        %1524 = vmatmul.mubr.bf16.gmra.mrb[0].mxu0 %v1489
        %v1525 = vpop.f32.mrb[0].mxu0
        %v1526 = vadd.f32 %v1461, %v1525
        %v1527 = vpop.f32.mrb[0].mxu0
        %v1528 = vpop.f32.mrb[0].mxu0
        %v1529 = vpop.f32.mrb[0].mxu0
        %1530 = vdwg.mxu0
        %v1531 = vadd.f32 %v1348, %v1526
        %1532 = vst.msk [vmem:[%s615] sm:$0xff] %vm766, %v1531
        %s1533 = sand.u32 %s402, 1
        %s1534 = scalar_lea.sflag [#allocation6], %s1533
        %s1535 = sand.u32 %s402, 1
        %s1536 = smul.addr %s1535, 8
        %s1537 = scalar_lea.vmem [#allocation15], %s1536
        // Predicated region
        $region113: #{tpu_custom_call.1} parent=83 // pred_check
          %p1538 = pneg %p412
        $region114: #{tpu_custom_call.1} parent=83 // pred_check_branch
          %1540 = sbr.rel (%p1538) target = $region116
        $region115: #{tpu_custom_call.1} parent=83 // pred_region
          %s1542 = ssub.s32 128, 128
          %1543 = vsyncadd %s1534, %s1542
          %s1544 = sadd.s32 %s39, %s38
          %s1545 = smul.addr %s1544, 128
          %s1546 = scalar_lea.hbm %s16, %s1545
          %s1548 = sshll.u32 %s1537, 4
          %s1549 = int_to_ptr.vmem [resolvable:$true] %s1548
          %1551 = dma.vmem_to_hbm [thread:$0]  %s1549, 128, %s1546, %s1534
        $region116: #{tpu_custom_call.1} parent=83 // pred_fallthru
          _
      $region84: #{tpu_custom_call.1} parent=5 // pred_fallthru
        _
      %p1552 = scmp.le.s32.totalorder 2, %s29
      // Predicated region
      $region117: #{tpu_custom_call.1} parent=5 // pred_check
        %p1553 = pneg %p1552
      $region118: #{tpu_custom_call.1} parent=5 // pred_check_branch
        %1555 = sbr.rel (%p1553) target = $region120
      $region119: #{tpu_custom_call.1} parent=5 // pred_region
        %s1556 = ssub.s32 %s29, 2
        // Predicated region
        $region121: #{tpu_custom_call.1} parent=119 // pred_check
          %p1557 = pneg %p418
        $region122: #{tpu_custom_call.1} parent=119 // pred_check_branch
          %1559 = sbr.rel (%p1557) target = $region124
        $region123: #{tpu_custom_call.1} parent=119 // pred_region
          %s1560 = sand.u32 %s403, 1
          %s1561 = scalar_lea.sflag [#allocation6], %s1560
          %s1562 = sand.u32 %s403, 1
          %s1563 = smul.addr %s1562, 8
          %s1564 = scalar_lea.vmem [#allocation15], %s1563
          %1565 = dma.done %s1561, 128
        $region124: #{tpu_custom_call.1} parent=119 // pred_fallthru
          _
      $region120: #{tpu_custom_call.1} parent=5 // pred_fallthru
        _
    $region6: #{tpu_custom_call.1} parent=1 // loop_footer
      %s33 = sadd.s32 1, %s29
    $region7: #{tpu_custom_call.1} parent=1 // loop_footer_branch
      %28 = sbr.rel target = $region3
    $region8: #{tpu_custom_call.1} parent=1 // loop_exit
      _
    %1566 = vsyncpa [#allocation5], 1
    %s1567 = scalar_lea.sflag [#allocation5], 1
    %1568 = vsyncpa %s1567, 1
    %1569 = vsyncpa [#allocation8], 1
    %1570 = vsyncpa [#allocation11], 1
    %1571 = vsyncpa [#allocation14], 1
    %1572 = vsyncpa [#allocation6], 1
    %s1573 = scalar_lea.sflag [#allocation6], 1
    %1574 = vsyncpa %s1573, 1

</llo_original>
